<compile_context>
chip_gen: v7x
topology: tpu7x:2x2x1
jax: 0.10.0
libtpu: 0.0.40
codegen_flags: <defaults>
</compile_context>

<pallas_src>
import functools

import jax
import jax.numpy as jnp
import numpy as np
from jax.experimental import pallas as pl
from jax.experimental.pallas import tpu as pltpu


def _round_up(x, m):
    return ((x + m - 1) // m) * m


# ----------------------------------------------------------------------------
# Pallas kernel: one batch-block (bblk batch elements) per grid step.
# ----------------------------------------------------------------------------
def _scalable_attention_kernel(
    states_ref, posr_ref, posc_ref, w_ref, b_ref, out_ref,
    *, radius_sq, pos_dim, num_agents, bblk, msg_dim, pw, wseg, bseg,
):
    f32 = jnp.float32
    N = num_agents
    BN = bblk * N

    def W(name):                       # static, full-lane (PW, PW) weight view
        r0 = wseg[name]
        return w_ref[r0:r0 + pw, :]

    def Bv(name):                      # static, full-lane (1, PW) bias row
        i = bseg[name]
        return b_ref[i:i + 1, :]

    states = states_ref[0]             # (BN, PW); lanes >= S are zero

    # ---- message_encoder: Linear -> ReLU -> Linear (flattened over block) ----
    h1 = jnp.maximum(
        jnp.dot(states, W("W1"), preferred_element_type=f32) + Bv("b1"), 0.0)
    messages = jnp.dot(h1, W("W2"), preferred_element_type=f32) + Bv("b2")   # (BN, PW)

    # Ones column in the (zero) padding lane `msg_dim`: the aggregation matmul
    # below then also produces the neighbour counts (no XLU row reduction).
    lane = jax.lax.broadcasted_iota(jnp.int32, (BN, pw), 1)
    messages = messages + jnp.where(lane == msg_dim, 1.0, 0.0)

    # ---- proximity adjacency + aggregation, batched per batch element -------
    pos_r = posr_ref[0]                # (bblk, N, P)   row layout
    pos_c = posc_ref[0]                # (bblk, P, N)   column layout (pre-transposed)

    diff = pos_r[:, :, 0:1] - pos_c[:, 0:1, :]
    d2 = diff * diff
    for p in range(1, pos_dim):        # static unroll (P is tiny)
        diff = pos_r[:, :, p:p + 1] - pos_c[:, p:p + 1, :]
        d2 = d2 + diff * diff          # (bblk, N, N)

    row_id = jax.lax.broadcasted_iota(jnp.int32, (bblk, N, N), 1)
    col_id = jax.lax.broadcasted_iota(jnp.int32, (bblk, N, N), 2)
    adj = jnp.where(jnp.logical_and(d2 < radius_sq, row_id != col_id), 1.0, 0.0)

    msgs_b = messages.reshape(bblk, N, pw)
    agg = jnp.einsum("bij,bjm->bim", adj, msgs_b, preferred_element_type=f32)
    counts = jnp.maximum(agg[:, :, msg_dim:msg_dim + 1], 1.0)       # ones-lane counts
    agg = (agg * pl.reciprocal(counts, approx=True)).reshape(BN, pw)

    # ---- message_aggregator on cat([messages, agg]) (split weights) ---------
    h2 = jnp.maximum(
        jnp.dot(messages, W("W3m"), preferred_element_type=f32)
        + jnp.dot(agg, W("W3a"), preferred_element_type=f32)
        + Bv("b3"), 0.0)
    final_msg = jnp.dot(h2, W("W4"), preferred_element_type=f32) + Bv("b4")

    # ---- output_projection on cat([states, final_msg]) (split weights) ------
    h3 = jnp.maximum(
        jnp.dot(states, W("W5s"), preferred_element_type=f32)
        + jnp.dot(final_msg, W("W5m"), preferred_element_type=f32)
        + Bv("b5"), 0.0)
    out = jnp.dot(h3, W("W6"), preferred_element_type=f32) + Bv("b6")

    out_ref[0] = states + out          # lane-dense (PW-wide) residual store


# ----------------------------------------------------------------------------
# Wrapper-side parameter packing: 2 slabs; every segment is a full (PW, PW)
# lane-dense tile (zero-padded), so no sub-128 column slices in the kernel.
# ----------------------------------------------------------------------------
def _pack_params(params, S, M, PW):
    segs = [
        ("W1",  params["W1"]),          # (S, H)
        ("W2",  params["W2"]),          # (H, M)
        ("W3m", params["W3"][:M]),      # (M, H)
        ("W3a", params["W3"][M:]),      # (M, H)
        ("W4",  params["W4"]),          # (H, M)
        ("W5s", params["W5"][:S]),      # (S, H)
        ("W5m", params["W5"][S:]),      # (M, H)
        ("W6",  params["W6"]),          # (H, S)
    ]
    wseg, blocks = {}, []
    for i, (name, m) in enumerate(segs):
        nr, nc = int(m.shape[0]), int(m.shape[1])
        wseg[name] = i * PW
        blk = jnp.zeros((PW, PW), jnp.float32).at[:nr, :nc].set(m.astype(jnp.float32))
        blocks.append(blk)
    wslab = jnp.concatenate(blocks, axis=0)        # (8*PW, PW)

    bnames = ["b1", "b2", "b3", "b4", "b5", "b6"]
    bseg = {}
    bslab = jnp.zeros((8, PW), jnp.float32)        # padded bias lanes stay 0
    for i, name in enumerate(bnames):
        vec = params[name].reshape(-1).astype(jnp.float32)
        bseg[name] = i
        bslab = bslab.at[i, :vec.shape[0]].set(vec)
    return wslab, wseg, bslab, bseg


def _choose_batch_block(B, N, target_rows=256):
    """Largest divisor of B keeping >=2 grid steps (v7x megacore) and a
    flattened MLP block of at most ~target_rows rows."""
    best = 1
    for d in range(1, B + 1):
        if B % d != 0:
            continue
        if B >= 2 and B // d < 2:
            continue                                  # keep nb >= 2
        if d * N <= max(target_rows, N):
            best = max(best, d)
    return best


# ----------------------------------------------------------------------------
# Wrapper: layout plumbing + pallas_call.
# ----------------------------------------------------------------------------
def scalable_attention(agent_states, agent_positions, params, neighbor_radius):
    B, N, S = agent_states.shape
    _, _, P = agent_positions.shape
    M = params["W2"].shape[1]
    H = params["W1"].shape[1]

    # One common lane-padded width for every activation / weight segment.
    # (M + 1: reserve one spare lane for the neighbour-count column.)
    PW = _round_up(max(S, M + 1, H), 128)

    wslab, wseg, bslab, bseg = _pack_params(params, S, M, PW)

    bblk = _choose_batch_block(B, N)
    nb = B // bblk
    bn = bblk * N

    states_pad = jnp.zeros((B, N, PW), jnp.float32).at[:, :, :S].set(
        agent_states.astype(jnp.float32))
    states3 = states_pad.reshape(nb, bn, PW)

    pos = agent_positions.astype(jnp.float32)
    posr4 = pos.reshape(nb, bblk, N, P)              # row layout
    posc4 = posr4.transpose(0, 1, 3, 2)              # column layout (no in-kernel transpose)

    kernel = functools.partial(
        _scalable_attention_kernel,
        radius_sq=float(neighbor_radius) ** 2,
        pos_dim=P, num_agents=N, bblk=bblk, msg_dim=M, pw=PW,
        wseg=wseg, bseg=bseg)

    out3 = pl.pallas_call(
        kernel,
        grid=(nb,),
        in_specs=[
            pl.BlockSpec((1, bn, PW), lambda g: (g, 0, 0)),
            pl.BlockSpec((1, bblk, N, P), lambda g: (g, 0, 0, 0)),
            pl.BlockSpec((1, bblk, P, N), lambda g: (g, 0, 0, 0)),
            pl.BlockSpec(wslab.shape, lambda g: (0, 0)),
            pl.BlockSpec(bslab.shape, lambda g: (0, 0)),
        ],
        out_specs=pl.BlockSpec((1, bn, PW), lambda g: (g, 0, 0)),
        out_shape=jax.ShapeDtypeStruct((nb, bn, PW), jnp.float32),
        compiler_params=pltpu.CompilerParams(
            dimension_semantics=("parallel",),       # batch-blocks are independent
            vmem_limit_bytes=48 * 1024 * 1024),      # above v5e/v6e/v7x scoped defaults
    )(states3, posr4, posc4, wslab, bslab)

    # slice the lane padding back off (kernel stores a lane-dense PW-wide slab)
    return out3.reshape(B, N, PW)[:, :, :S]


# ----------------------------------------------------------------------------
# Pure-JAX reference (mirrors the PyTorch forward exactly) for verification.
# ----------------------------------------------------------------------------
def reference_forward(agent_states, agent_positions, params, neighbor_radius):
    B, N, S = agent_states.shape

    def mlp(x, w1, b1, w2, b2):
        return jnp.maximum(x @ w1 + b1, 0.0) @ w2 + b2

    messages = mlp(agent_states, params["W1"], params["b1"], params["W2"], params["b2"])
    diff = agent_positions[:, :, None, :] - agent_positions[:, None, :, :]
    dist = jnp.sqrt(jnp.sum(diff * diff, axis=-1))
    adj = (dist < neighbor_radius).astype(jnp.float32)
    adj = adj * (1.0 - jnp.eye(N, dtype=jnp.float32)[None])
    adj = adj / jnp.maximum(adj.sum(-1, keepdims=True), 1.0)
    aggregated = jnp.einsum("bij,bjm->bim", adj, messages)
    combined = jnp.concatenate([messages, aggregated], axis=-1)
    final_msg = mlp(combined, params["W3"], params["b3"], params["W4"], params["b4"])
    cf = jnp.concatenate([agent_states, final_msg], axis=-1)
    out = mlp(cf, params["W5"], params["b5"], params["W6"], params["b6"])
    return agent_states + out


# ----------------------------------------------------------------------------
# Deterministic parameter init (synthetic; shapes follow the module __init__).
# Weights stored as [in, out] (i.e. torch W.T); biases as [1, out].
# ----------------------------------------------------------------------------
def init_params(key, input_dim, message_dim, hidden_dim):
    S, M, H = input_dim, message_dim, hidden_dim
    ks = jax.random.split(key, 12)
    scale = 0.1

    def w(k, shape):
        return (scale * jax.random.normal(k, shape)).astype(jnp.float32)

    return {
        # message_encoder
        "W1": w(ks[0], (S, H)), "b1": w(ks[1], (1, H)),
        "W2": w(ks[2], (H, M)), "b2": w(ks[3], (1, M)),
        # message_aggregator
        "W3": w(ks[4], (2 * M, H)), "b3": w(ks[5], (1, H)),
        "W4": w(ks[6], (H, M)), "b4": w(ks[7], (1, M)),
        # output_projection
        "W5": w(ks[8], (S + M, H)), "b5": w(ks[9], (1, H)),
        "W6": w(ks[10], (H, S)), "b6": w(ks[11], (1, S)),
    }


if __name__ == "__main__":
    B, N = 2, 8
    input_dim, pos_dim = 16, 2
    message_dim, hidden_dim = 8, 32
    neighbor_radius = 1.0

    key = jax.random.PRNGKey(0)
    k_states, k_pos, k_params = jax.random.split(key, 3)

    agent_states = jax.random.normal(k_states, (B, N, input_dim), dtype=jnp.float32)
    agent_positions = jax.random.uniform(k_pos, (B, N, pos_dim), dtype=jnp.float32) * 2.0
    params = init_params(k_params, input_dim, message_dim, hidden_dim)

    out = scalable_attention(agent_states, agent_positions, params, neighbor_radius)
    out = jax.block_until_ready(out)

    ref = reference_forward(agent_states, agent_positions, params, neighbor_radius)
    np.testing.assert_allclose(np.asarray(out), np.asarray(ref), rtol=1e-4, atol=1e-4)

    print("KERNEL_OK")
</pallas_src>

<mosaic_0001>
module attributes {stable_mosaic.version = 11 : i64} {
  func.func @_scalable_attention_kernel(%arg0: i32, %arg1: memref<1x8x128xf32, #tpu.memory_space<vmem>>, %arg2: memref<1x1x8x2xf32, #tpu.memory_space<vmem>>, %arg3: memref<1x1x2x8xf32, #tpu.memory_space<vmem>>, %arg4: memref<1024x128xf32, #tpu.memory_space<vmem>>, %arg5: memref<8x128xf32, #tpu.memory_space<vmem>>, %arg6: memref<1x8x128xf32, #tpu.memory_space<vmem>>) attributes {dimension_semantics = [#tpu.dimension_semantics<parallel>], iteration_bounds = array<i64: 2>, scalar_prefetch = 0 : i64, scratch_operands = 0 : i64, tpu.core_type = #tpu.core_type<tc>, window_params = [{transform_indices = @transform_0, window_bounds = array<i64: 1, 8, 128>}, {transform_indices = @transform_1, window_bounds = array<i64: 1, 1, 8, 2>}, {transform_indices = @transform_2, window_bounds = array<i64: 1, 1, 2, 8>}, {pipeline_mode = #tpu.pipeline_mode<synchronous>, transform_indices = @transform_3, window_bounds = array<i64: 1024, 128>}, {pipeline_mode = #tpu.pipeline_mode<synchronous>, transform_indices = @transform_4, window_bounds = array<i64: 8, 128>}, {transform_indices = @transform_5, window_bounds = array<i64: 1, 8, 128>}]} {
    %c0 = arith.constant 0 : index
    %c0_0 = arith.constant 0 : index
    %c0_1 = arith.constant 0 : index
    %0 = vector.load %arg1[%c0, %c0_0, %c0_1] : memref<1x8x128xf32, #tpu.memory_space<vmem>>, vector<1x8x128xf32>
    %1 = vector.shape_cast %0 : vector<1x8x128xf32> to vector<8x128xf32>
    %c0_2 = arith.constant 0 : index
    %c0_3 = arith.constant 0 : index
    %2 = vector.load %arg4[%c0_2, %c0_3] : memref<1024x128xf32, #tpu.memory_space<vmem>>, vector<128x128xf32>
    %cst = arith.constant dense<0.000000e+00> : vector<8x128xf32>
    %3 = tpu.matmul %1, %2, %cst {dimension_numbers = #tpu.dot_dimension_numbers<[1], [0], [0], [1], [0, 0, 1, 1], [], []>} : vector<8x128xf32>, vector<128x128xf32>, vector<8x128xf32> -> vector<8x128xf32>
    %c0_4 = arith.constant 0 : index
    %c0_5 = arith.constant 0 : index
    %4 = vector.load %arg5[%c0_4, %c0_5] : memref<8x128xf32, #tpu.memory_space<vmem>>, vector<1x128xf32>
    %5 = vector.broadcast %4 : vector<1x128xf32> to vector<8x128xf32>
    %6 = arith.addf %3, %5 : vector<8x128xf32>
    %cst_6 = arith.constant 0.000000e+00 : f32
    %7 = vector.broadcast %cst_6 : f32 to vector<8x128xf32>
    %8 = arith.maximumf %6, %7 : vector<8x128xf32>
    %c128 = arith.constant 128 : index
    %c0_7 = arith.constant 0 : index
    %9 = vector.load %arg4[%c128, %c0_7] : memref<1024x128xf32, #tpu.memory_space<vmem>>, vector<128x128xf32>
    %cst_8 = arith.constant dense<0.000000e+00> : vector<8x128xf32>
    %10 = tpu.matmul %8, %9, %cst_8 {dimension_numbers = #tpu.dot_dimension_numbers<[1], [0], [0], [1], [0, 0, 1, 1], [], []>} : vector<8x128xf32>, vector<128x128xf32>, vector<8x128xf32> -> vector<8x128xf32>
    %c1 = arith.constant 1 : index
    %c0_9 = arith.constant 0 : index
    %11 = vector.load %arg5[%c1, %c0_9] : memref<8x128xf32, #tpu.memory_space<vmem>>, vector<1x128xf32>
    %12 = vector.broadcast %11 : vector<1x128xf32> to vector<8x128xf32>
    %13 = arith.addf %10, %12 : vector<8x128xf32>
    %14 = tpu.iota {dimensions = array<i32: 1>} : vector<8x128xi32>
    %c8_i32 = arith.constant 8 : i32
    %15 = vector.broadcast %c8_i32 : i32 to vector<8x128xi32>
    %16 = arith.cmpi eq, %14, %15 : vector<8x128xi32>
    %cst_10 = arith.constant 1.000000e+00 : f32
    %cst_11 = arith.constant 0.000000e+00 : f32
    %17 = vector.broadcast %cst_10 : f32 to vector<8x128xf32>
    %18 = vector.broadcast %cst_11 : f32 to vector<8x128xf32>
    %19 = arith.select %16, %17, %18 : vector<8x128xi1>, vector<8x128xf32>
    %20 = arith.addf %13, %19 : vector<8x128xf32>
    %c0_12 = arith.constant 0 : index
    %c0_13 = arith.constant 0 : index
    %c0_14 = arith.constant 0 : index
    %c0_15 = arith.constant 0 : index
    %21 = vector.load %arg2[%c0_12, %c0_13, %c0_14, %c0_15] : memref<1x1x8x2xf32, #tpu.memory_space<vmem>>, vector<1x1x8x2xf32>
    %22 = vector.shape_cast %21 : vector<1x1x8x2xf32> to vector<1x8x2xf32>
    %c0_16 = arith.constant 0 : index
    %c0_17 = arith.constant 0 : index
    %c0_18 = arith.constant 0 : index
    %c0_19 = arith.constant 0 : index
    %23 = vector.load %arg3[%c0_16, %c0_17, %c0_18, %c0_19] : memref<1x1x2x8xf32, #tpu.memory_space<vmem>>, vector<1x1x2x8xf32>
    %24 = vector.shape_cast %23 : vector<1x1x2x8xf32> to vector<1x2x8xf32>
    %25 = vector.extract_strided_slice %22 {offsets = [0, 0, 0], sizes = [1, 8, 1], strides = [1, 1, 1]} : vector<1x8x2xf32> to vector<1x8x1xf32>
    %26 = vector.extract_strided_slice %24 {offsets = [0, 0, 0], sizes = [1, 1, 8], strides = [1, 1, 1]} : vector<1x2x8xf32> to vector<1x1x8xf32>
    %27 = vector.broadcast %25 : vector<1x8x1xf32> to vector<1x8x8xf32>
    %28 = vector.broadcast %26 : vector<1x1x8xf32> to vector<1x8x8xf32>
    %29 = arith.subf %27, %28 : vector<1x8x8xf32>
    %30 = arith.mulf %29, %29 : vector<1x8x8xf32>
    %31 = vector.extract_strided_slice %22 {offsets = [0, 0, 1], sizes = [1, 8, 1], strides = [1, 1, 1]} : vector<1x8x2xf32> to vector<1x8x1xf32>
    %32 = vector.extract_strided_slice %24 {offsets = [0, 1, 0], sizes = [1, 1, 8], strides = [1, 1, 1]} : vector<1x2x8xf32> to vector<1x1x8xf32>
    %33 = vector.broadcast %31 : vector<1x8x1xf32> to vector<1x8x8xf32>
    %34 = vector.broadcast %32 : vector<1x1x8xf32> to vector<1x8x8xf32>
    %35 = arith.subf %33, %34 : vector<1x8x8xf32>
    %36 = arith.mulf %35, %35 : vector<1x8x8xf32>
    %37 = arith.addf %30, %36 : vector<1x8x8xf32>
    %38 = tpu.iota {dimensions = array<i32: 1>} : vector<1x8x8xi32>
    %39 = tpu.iota {dimensions = array<i32: 2>} : vector<1x8x8xi32>
    %cst_20 = arith.constant 1.000000e+00 : f32
    %40 = vector.broadcast %cst_20 : f32 to vector<1x8x8xf32>
    %41 = arith.cmpf olt, %37, %40 : vector<1x8x8xf32>
    %42 = arith.cmpi ne, %38, %39 : vector<1x8x8xi32>
    %43 = arith.andi %41, %42 : vector<1x8x8xi1>
    %cst_21 = arith.constant 1.000000e+00 : f32
    %cst_22 = arith.constant 0.000000e+00 : f32
    %44 = vector.broadcast %cst_21 : f32 to vector<1x8x8xf32>
    %45 = vector.broadcast %cst_22 : f32 to vector<1x8x8xf32>
    %46 = arith.select %43, %44, %45 : vector<1x8x8xi1>, vector<1x8x8xf32>
    %47 = vector.shape_cast %20 : vector<8x128xf32> to vector<1x8x128xf32>
    "tpu.trace_start"() <{level = 10 : i32, message = "bij,bjm->bim"}> : () -> ()
    %cst_23 = arith.constant dense<0.000000e+00> : vector<1x8x128xf32>
    %48 = tpu.matmul %46, %47, %cst_23 {dimension_numbers = #tpu.dot_dimension_numbers<[2], [1], [1], [2], [0, 0, 0, 1, 1, 2], [0], [0]>} : vector<1x8x8xf32>, vector<1x8x128xf32>, vector<1x8x128xf32> -> vector<1x8x128xf32>
    "tpu.trace_stop"() : () -> ()
    %49 = vector.extract_strided_slice %48 {offsets = [0, 0, 8], sizes = [1, 8, 1], strides = [1, 1, 1]} : vector<1x8x128xf32> to vector<1x8x1xf32>
    %cst_24 = arith.constant 1.000000e+00 : f32
    %50 = vector.broadcast %cst_24 : f32 to vector<1x8x1xf32>
    %51 = arith.maximumf %49, %50 : vector<1x8x1xf32>
    %52 = tpu.reciprocal %51 {approx = true} : vector<1x8x1xf32> -> vector<1x8x1xf32>
    %53 = vector.broadcast %52 : vector<1x8x1xf32> to vector<1x8x128xf32>
    %54 = arith.mulf %48, %53 : vector<1x8x128xf32>
    %55 = vector.shape_cast %54 : vector<1x8x128xf32> to vector<8x128xf32>
    %c256 = arith.constant 256 : index
    %c0_25 = arith.constant 0 : index
    %56 = vector.load %arg4[%c256, %c0_25] : memref<1024x128xf32, #tpu.memory_space<vmem>>, vector<128x128xf32>
    %cst_26 = arith.constant dense<0.000000e+00> : vector<8x128xf32>
    %57 = tpu.matmul %20, %56, %cst_26 {dimension_numbers = #tpu.dot_dimension_numbers<[1], [0], [0], [1], [0, 0, 1, 1], [], []>} : vector<8x128xf32>, vector<128x128xf32>, vector<8x128xf32> -> vector<8x128xf32>
    %c384 = arith.constant 384 : index
    %c0_27 = arith.constant 0 : index
    %58 = vector.load %arg4[%c384, %c0_27] : memref<1024x128xf32, #tpu.memory_space<vmem>>, vector<128x128xf32>
    %cst_28 = arith.constant dense<0.000000e+00> : vector<8x128xf32>
    %59 = tpu.matmul %55, %58, %cst_28 {dimension_numbers = #tpu.dot_dimension_numbers<[1], [0], [0], [1], [0, 0, 1, 1], [], []>} : vector<8x128xf32>, vector<128x128xf32>, vector<8x128xf32> -> vector<8x128xf32>
    %60 = arith.addf %57, %59 : vector<8x128xf32>
    %c2 = arith.constant 2 : index
    %c0_29 = arith.constant 0 : index
    %61 = vector.load %arg5[%c2, %c0_29] : memref<8x128xf32, #tpu.memory_space<vmem>>, vector<1x128xf32>
    %62 = vector.broadcast %61 : vector<1x128xf32> to vector<8x128xf32>
    %63 = arith.addf %60, %62 : vector<8x128xf32>
    %cst_30 = arith.constant 0.000000e+00 : f32
    %64 = vector.broadcast %cst_30 : f32 to vector<8x128xf32>
    %65 = arith.maximumf %63, %64 : vector<8x128xf32>
    %c512 = arith.constant 512 : index
    %c0_31 = arith.constant 0 : index
    %66 = vector.load %arg4[%c512, %c0_31] : memref<1024x128xf32, #tpu.memory_space<vmem>>, vector<128x128xf32>
    %cst_32 = arith.constant dense<0.000000e+00> : vector<8x128xf32>
    %67 = tpu.matmul %65, %66, %cst_32 {dimension_numbers = #tpu.dot_dimension_numbers<[1], [0], [0], [1], [0, 0, 1, 1], [], []>} : vector<8x128xf32>, vector<128x128xf32>, vector<8x128xf32> -> vector<8x128xf32>
    %c3 = arith.constant 3 : index
    %c0_33 = arith.constant 0 : index
    %68 = vector.load %arg5[%c3, %c0_33] : memref<8x128xf32, #tpu.memory_space<vmem>>, vector<1x128xf32>
    %69 = vector.broadcast %68 : vector<1x128xf32> to vector<8x128xf32>
    %70 = arith.addf %67, %69 : vector<8x128xf32>
    %c640 = arith.constant 640 : index
    %c0_34 = arith.constant 0 : index
    %71 = vector.load %arg4[%c640, %c0_34] : memref<1024x128xf32, #tpu.memory_space<vmem>>, vector<128x128xf32>
    %cst_35 = arith.constant dense<0.000000e+00> : vector<8x128xf32>
    %72 = tpu.matmul %1, %71, %cst_35 {dimension_numbers = #tpu.dot_dimension_numbers<[1], [0], [0], [1], [0, 0, 1, 1], [], []>} : vector<8x128xf32>, vector<128x128xf32>, vector<8x128xf32> -> vector<8x128xf32>
    %c768 = arith.constant 768 : index
    %c0_36 = arith.constant 0 : index
    %73 = vector.load %arg4[%c768, %c0_36] : memref<1024x128xf32, #tpu.memory_space<vmem>>, vector<128x128xf32>
    %cst_37 = arith.constant dense<0.000000e+00> : vector<8x128xf32>
    %74 = tpu.matmul %70, %73, %cst_37 {dimension_numbers = #tpu.dot_dimension_numbers<[1], [0], [0], [1], [0, 0, 1, 1], [], []>} : vector<8x128xf32>, vector<128x128xf32>, vector<8x128xf32> -> vector<8x128xf32>
    %75 = arith.addf %72, %74 : vector<8x128xf32>
    %c4 = arith.constant 4 : index
    %c0_38 = arith.constant 0 : index
    %76 = vector.load %arg5[%c4, %c0_38] : memref<8x128xf32, #tpu.memory_space<vmem>>, vector<1x128xf32>
    %77 = vector.broadcast %76 : vector<1x128xf32> to vector<8x128xf32>
    %78 = arith.addf %75, %77 : vector<8x128xf32>
    %cst_39 = arith.constant 0.000000e+00 : f32
    %79 = vector.broadcast %cst_39 : f32 to vector<8x128xf32>
    %80 = arith.maximumf %78, %79 : vector<8x128xf32>
    %c896 = arith.constant 896 : index
    %c0_40 = arith.constant 0 : index
    %81 = vector.load %arg4[%c896, %c0_40] : memref<1024x128xf32, #tpu.memory_space<vmem>>, vector<128x128xf32>
    %cst_41 = arith.constant dense<0.000000e+00> : vector<8x128xf32>
    %82 = tpu.matmul %80, %81, %cst_41 {dimension_numbers = #tpu.dot_dimension_numbers<[1], [0], [0], [1], [0, 0, 1, 1], [], []>} : vector<8x128xf32>, vector<128x128xf32>, vector<8x128xf32> -> vector<8x128xf32>
    %c5 = arith.constant 5 : index
    %c0_42 = arith.constant 0 : index
    %83 = vector.load %arg5[%c5, %c0_42] : memref<8x128xf32, #tpu.memory_space<vmem>>, vector<1x128xf32>
    %84 = vector.broadcast %83 : vector<1x128xf32> to vector<8x128xf32>
    %85 = arith.addf %82, %84 : vector<8x128xf32>
    %86 = arith.addf %1, %85 : vector<8x128xf32>
    %c0_43 = arith.constant 0 : index
    %c0_44 = arith.constant 0 : index
    %c0_45 = arith.constant 0 : index
    %87 = vector.load %arg6[%c0_43, %c0_44, %c0_45] : memref<1x8x128xf32, #tpu.memory_space<vmem>>, vector<1x8x128xf32>
    %88 = vector.shape_cast %87 : vector<1x8x128xf32> to vector<8x128xf32>
    %89 = vector.shape_cast %86 : vector<8x128xf32> to vector<1x8x128xf32>
    tpu.vector_store %arg6[%c0_43, %c0_44, %c0_45], %89 {strides = array<i32>} : memref<1x8x128xf32, #tpu.memory_space<vmem>>, vector<1x8x128xf32>,
    return
  }
  func.func @transform_0(%arg0: i32) -> (i32, i32, i32) {
    %c0_i32 = arith.constant 0 : i32
    %c0_i32_0 = arith.constant 0 : i32
    %c0_i32_1 = arith.constant 0 : i32
    return %arg0, %c0_i32, %c0_i32_0 : i32, i32, i32
  }
  func.func @transform_1(%arg0: i32) -> (i32, i32, i32, i32) {
    %c0_i32 = arith.constant 0 : i32
    %c0_i32_0 = arith.constant 0 : i32
    %c0_i32_1 = arith.constant 0 : i32
    %c0_i32_2 = arith.constant 0 : i32
    return %arg0, %c0_i32, %c0_i32_0, %c0_i32_1 : i32, i32, i32, i32
  }
  func.func @transform_2(%arg0: i32) -> (i32, i32, i32, i32) {
    %c0_i32 = arith.constant 0 : i32
    %c0_i32_0 = arith.constant 0 : i32
    %c0_i32_1 = arith.constant 0 : i32
    %c0_i32_2 = arith.constant 0 : i32
    return %arg0, %c0_i32, %c0_i32_0, %c0_i32_1 : i32, i32, i32, i32
  }
  func.func @transform_3(%arg0: i32) -> (i32, i32) {
    %c0_i32 = arith.constant 0 : i32
    %c0_i32_0 = arith.constant 0 : i32
    %c0_i32_1 = arith.constant 0 : i32
    return %c0_i32, %c0_i32_0 : i32, i32
  }
  func.func @transform_4(%arg0: i32) -> (i32, i32) {
    %c0_i32 = arith.constant 0 : i32
    %c0_i32_0 = arith.constant 0 : i32
    %c0_i32_1 = arith.constant 0 : i32
    return %c0_i32, %c0_i32_0 : i32, i32
  }
  func.func @transform_5(%arg0: i32) -> (i32, i32, i32) {
    %c0_i32 = arith.constant 0 : i32
    %c0_i32_0 = arith.constant 0 : i32
    %c0_i32_1 = arith.constant 0 : i32
    return %arg0, %c0_i32, %c0_i32_0 : i32, i32, i32
  }
}

</mosaic_0001>

<llo_original>
// kernel: tpu_custom_call.1
$region0: #{tpu_custom_call.1}
  #allocation0 [shape = 'u32[]', space=smem, size = 0x4, offset = 0x4, fixed_abs, tag = 'smem constant byte address 0x4 - core index']
  #allocation1 [shape = 'u32[144,128]{1,0:T(1,128)}', space=vmem, size = 0x12000, scoped, tag = 'internal scratch']
  %s0 = inlined_call_operand.vmem [shape: f32[2,8,128], index: 0, kind: input, shape index: {}]
  %s1 = inlined_call_operand.vmem [shape: f32[2,1,8,2], index: 1, kind: input, shape index: {}]
  %s2 = inlined_call_operand.hbm [shape: f32[2,1,2,8], index: 2, kind: input, shape index: {}]
  %s3 = inlined_call_operand.hbm [shape: f32[1024,128], index: 3, kind: input, shape index: {}]
  %s4 = inlined_call_operand.vmem [shape: f32[8,128], index: 4, kind: input, shape index: {}]
  %s5 = inlined_call_operand.hbm [shape: f32[2,8,128], index: 5, kind: output, shape index: {}]
  %s6 = sld [smem:[#allocation0]]
  $region61: #{tpu_custom_call.1} parent=0
    _
  %s8 = ssub.s32 1, %s6
  %s9 = scalar_select 0, %s8, %s6
  $region1: #{tpu_custom_call.1} parent=0
    #allocation2 [shape = 'u8[2048]{0}', space=vmem, size = 0x800, scoped, tag = 'input window, operand 2']
    #allocation3 [shape = 's32[2]{0}', space=sflag, size = 0x8, scoped, tag = 'scoped memory for tpu_custom_call.1']
    #allocation4 [shape = 's32[2]{0}', space=sflag, size = 0x8, scoped, tag = 'scoped memory for tpu_custom_call.1']
    #allocation5 [shape = 'u8[524288]{0}', space=vmem, size = 0x80000, scoped, tag = 'input window, operand 3, single buffered']
    #allocation6 [shape = 's32[1]{0}', space=sflag, size = 0x4, scoped, tag = 'scoped memory for tpu_custom_call.1']
    #allocation7 [shape = 'u8[8192]{0}', space=vmem, size = 0x2000, scoped, tag = 'output window, operand 0']
    %10 = vsyncpa [#allocation3], 0
    %s11 = scalar_lea.sflag [#allocation3], 1
    %12 = vsyncpa %s11, 0
    %13 = vsyncpa [#allocation6], 0
    %14 = vsyncpa [#allocation4], 0
    %s15 = scalar_lea.sflag [#allocation4], 1
    %16 = vsyncpa %s15, 0
    loop: start=0, step=1, limit=4
    $region2: #{tpu_custom_call.1} parent=1 // loop_pre_header
      _
    $region3: #{tpu_custom_call.1} parent=1 // loop_header
      %s18 = sphi 0, %s22
      %p19 = scmp.ge.s32.totalorder %s18, 4
      %s28 = sphi 0, %s30
      %s31 = sphi 0, %s28
      %s32 = sphi 0, %s31
      %s48 = sphi 0, %s32
      %s54 = sphi 0, %s56
      %s57 = sphi 0, %s54
      %s58 = sphi 0, %s57
      %s74 = sphi 0, %s58
      %s80 = sphi 0, %s82
      %s83 = sphi 0, %s80
      %s84 = sphi 0, %s83
      %s100 = sphi 0, %s84
      %s104 = sphi 0, %s104
      %s106 = sphi 0, %s104
      %s107 = sphi 0, %s106
      %s121 = sphi 0, %s107
      %s125 = sphi 0, %s125
      %s127 = sphi 0, %s125
      %s128 = sphi 0, %s127
      %s142 = sphi 0, %s128
      %s148 = sphi 0, %s150
      %s151 = sphi 0, %s148
      %s152 = sphi 0, %s151
      %s168 = sphi 0, %s152
    $region4: #{tpu_custom_call.1} parent=1 // loop_header_branch
      %21 = sbr.rel (%p19) target = $region8
    $region5: #{tpu_custom_call.1} parent=1 // loop_body
      %s23 = ssub.s32 %s18, 1
      %s24 = ssub.s32 %s18, 2
      %s25 = sadd.s32 %s18, 1
      %s26 = ssub.s32 %s18, %s25
      %p27 = scmp.eq.s32.totalorder %s26, 0
      %s29 = sadd.s32 %s28, 1
      %s30 = scalar_select %p27, %s28, %s29
      %p33 = pneg %p27
      %p34 = scmp.eq.s32.totalorder %s18, 1
      %p35 = por %p33, %p34
      %p36 = scmp.ne.s32.totalorder %s28, %s31
      %p37 = scmp.eq.s32.totalorder %s18, 0
      %p38 = por %p36, %p37
      %p39 = scmp.ne.s32.totalorder %s28, %s31
      %p40 = scmp.eq.s32.totalorder %s23, 1
      %p41 = por %p39, %p40
      %p42 = scmp.ne.s32.totalorder %s31, %s32
      %p43 = scmp.eq.s32.totalorder %s23, 0
      %p44 = por %p42, %p43
      %p45 = scmp.ne.s32.totalorder %s31, %s32
      %p46 = scmp.eq.s32.totalorder %s24, 1
      %p47 = por %p45, %p46
      %p49 = scmp.ne.s32.totalorder %s32, %s48
      %p50 = scmp.eq.s32.totalorder %s24, 0
      %p51 = por %p49, %p50
      %s52 = ssub.s32 %s18, %s25
      %p53 = scmp.eq.s32.totalorder %s52, 0
      %s55 = sadd.s32 %s54, 1
      %s56 = scalar_select %p53, %s54, %s55
      %p59 = pneg %p53
      %p60 = scmp.eq.s32.totalorder %s18, 1
      %p61 = por %p59, %p60
      %p62 = scmp.ne.s32.totalorder %s54, %s57
      %p63 = scmp.eq.s32.totalorder %s18, 0
      %p64 = por %p62, %p63
      %p65 = scmp.ne.s32.totalorder %s54, %s57
      %p66 = scmp.eq.s32.totalorder %s23, 1
      %p67 = por %p65, %p66
      %p68 = scmp.ne.s32.totalorder %s57, %s58
      %p69 = scmp.eq.s32.totalorder %s23, 0
      %p70 = por %p68, %p69
      %p71 = scmp.ne.s32.totalorder %s57, %s58
      %p72 = scmp.eq.s32.totalorder %s24, 1
      %p73 = por %p71, %p72
      %p75 = scmp.ne.s32.totalorder %s58, %s74
      %p76 = scmp.eq.s32.totalorder %s24, 0
      %p77 = por %p75, %p76
      %s78 = ssub.s32 %s18, %s25
      %p79 = scmp.eq.s32.totalorder %s78, 0
      %s81 = sadd.s32 %s80, 1
      %s82 = scalar_select %p79, %s80, %s81
      %p85 = pneg %p79
      %p86 = scmp.eq.s32.totalorder %s18, 1
      %p87 = por %p85, %p86
      %p88 = scmp.ne.s32.totalorder %s80, %s83
      %p89 = scmp.eq.s32.totalorder %s18, 0
      %p90 = por %p88, %p89
      %p91 = scmp.ne.s32.totalorder %s80, %s83
      %p92 = scmp.eq.s32.totalorder %s23, 1
      %p93 = por %p91, %p92
      %p94 = scmp.ne.s32.totalorder %s83, %s84
      %p95 = scmp.eq.s32.totalorder %s23, 0
      %p96 = por %p94, %p95
      %p97 = scmp.ne.s32.totalorder %s83, %s84
      %p98 = scmp.eq.s32.totalorder %s24, 1
      %p99 = por %p97, %p98
      %p101 = scmp.ne.s32.totalorder %s84, %s100
      %p102 = scmp.eq.s32.totalorder %s24, 0
      %p103 = por %p101, %p102
      %s105 = sadd.s32 %s104, 1
      %p108 = scmp.eq.s32.totalorder %s18, 1
      %p109 = scmp.ne.s32.totalorder %s104, %s106
      %p110 = scmp.eq.s32.totalorder %s18, 0
      %p111 = por %p109, %p110
      %p112 = scmp.ne.s32.totalorder %s104, %s106
      %p113 = scmp.eq.s32.totalorder %s23, 1
      %p114 = por %p112, %p113
      %p115 = scmp.ne.s32.totalorder %s106, %s107
      %p116 = scmp.eq.s32.totalorder %s23, 0
      %p117 = por %p115, %p116
      %p118 = scmp.ne.s32.totalorder %s106, %s107
      %p119 = scmp.eq.s32.totalorder %s24, 1
      %p120 = por %p118, %p119
      %p122 = scmp.ne.s32.totalorder %s107, %s121
      %p123 = scmp.eq.s32.totalorder %s24, 0
      %p124 = por %p122, %p123
      %s126 = sadd.s32 %s125, 1
      %p129 = scmp.eq.s32.totalorder %s18, 1
      %p130 = scmp.ne.s32.totalorder %s125, %s127
      %p131 = scmp.eq.s32.totalorder %s18, 0
      %p132 = por %p130, %p131
      %p133 = scmp.ne.s32.totalorder %s125, %s127
      %p134 = scmp.eq.s32.totalorder %s23, 1
      %p135 = por %p133, %p134
      %p136 = scmp.ne.s32.totalorder %s127, %s128
      %p137 = scmp.eq.s32.totalorder %s23, 0
      %p138 = por %p136, %p137
      %p139 = scmp.ne.s32.totalorder %s127, %s128
      %p140 = scmp.eq.s32.totalorder %s24, 1
      %p141 = por %p139, %p140
      %p143 = scmp.ne.s32.totalorder %s128, %s142
      %p144 = scmp.eq.s32.totalorder %s24, 0
      %p145 = por %p143, %p144
      %s146 = ssub.s32 %s18, %s25
      %p147 = scmp.eq.s32.totalorder %s146, 0
      %s149 = sadd.s32 %s148, 1
      %s150 = scalar_select %p147, %s148, %s149
      %p153 = pneg %p147
      %p154 = scmp.eq.s32.totalorder %s18, 1
      %p155 = por %p153, %p154
      %p156 = scmp.ne.s32.totalorder %s148, %s151
      %p157 = scmp.eq.s32.totalorder %s18, 0
      %p158 = por %p156, %p157
      %p159 = scmp.ne.s32.totalorder %s148, %s151
      %p160 = scmp.eq.s32.totalorder %s23, 1
      %p161 = por %p159, %p160
      %p162 = scmp.ne.s32.totalorder %s151, %s152
      %p163 = scmp.eq.s32.totalorder %s23, 0
      %p164 = por %p162, %p163
      %p165 = scmp.ne.s32.totalorder %s151, %s152
      %p166 = scmp.eq.s32.totalorder %s24, 1
      %p167 = por %p165, %p166
      %p169 = scmp.ne.s32.totalorder %s152, %s168
      %p170 = scmp.eq.s32.totalorder %s24, 0
      %p171 = por %p169, %p170
      %p172 = scmp.le.s32.totalorder 1, %s18
      %p173 = scmp.lt.s32.totalorder %s18, 3
      %p174 = pnand %p172, %p173
      %p175 = pneg %p174
      // Predicated region
      $region9: #{tpu_custom_call.1} parent=5 // pred_check
        _
      $region10: #{tpu_custom_call.1} parent=5 // pred_check_branch
        %177 = sbr.rel (%p174) target = $region12
      $region11: #{tpu_custom_call.1} parent=5 // pred_region
        %s178 = ssub.s32 %s18, 1
        // Predicated region
        $region13: #{tpu_custom_call.1} parent=11 // pred_check
          %p179 = pneg %p117
        $region14: #{tpu_custom_call.1} parent=11 // pred_check_branch
          %181 = sbr.rel (%p179) target = $region16
        $region15: #{tpu_custom_call.1} parent=11 // pred_region
          %s183 = ssub.s32 16384, 16384
          %184 = vsyncadd [#allocation6], %s183
          %s185 = sshll.u32 [#allocation5], 4
          %s186 = int_to_ptr.vmem [resolvable:$true] %s185
          %191 = dma.hbm_to_vmem [thread:$0]  %s3, 16384, %s186, [#allocation6], 128, 128, 8
        $region16: #{tpu_custom_call.1} parent=11 // pred_fallthru
          _
        // Predicated region
        $region17: #{tpu_custom_call.1} parent=11 // pred_check
          %p192 = pneg %p138
        $region18: #{tpu_custom_call.1} parent=11 // pred_check_branch
          %194 = sbr.rel (%p192) target = $region20
        $region19: #{tpu_custom_call.1} parent=11 // pred_region
          _
        $region20: #{tpu_custom_call.1} parent=11 // pred_fallthru
          _
      $region12: #{tpu_custom_call.1} parent=5 // pred_fallthru
        _
      %p195 = scmp.lt.s32.totalorder %s18, 2
      // Predicated region
      $region21: #{tpu_custom_call.1} parent=5 // pred_check
        %p196 = pneg %p195
      $region22: #{tpu_custom_call.1} parent=5 // pred_check_branch
        %198 = sbr.rel (%p196) target = $region24
      $region23: #{tpu_custom_call.1} parent=5 // pred_region
        // Predicated region
        $region25: #{tpu_custom_call.1} parent=23 // pred_check
          %p199 = pneg %p38
        $region26: #{tpu_custom_call.1} parent=23 // pred_check_branch
          %201 = sbr.rel (%p199) target = $region28
        $region27: #{tpu_custom_call.1} parent=23 // pred_region
          %p202 = scmp.lt.s32.totalorder %s18, 1
          %s203 = scalar_select %p202, %s18, 1
          %s204 = smul.addr %s203, 8
          %s205 = scalar_lea.vmem %s0, %s204
        $region28: #{tpu_custom_call.1} parent=23 // pred_fallthru
          _
        // Predicated region
        $region29: #{tpu_custom_call.1} parent=23 // pred_check
          %p206 = pneg %p64
        $region30: #{tpu_custom_call.1} parent=23 // pred_check_branch
          %208 = sbr.rel (%p206) target = $region32
        $region31: #{tpu_custom_call.1} parent=23 // pred_region
          %p209 = scmp.lt.s32.totalorder %s18, 1
          %s210 = scalar_select %p209, %s18, 1
          %s211 = smul.addr %s210, 8
          %s212 = scalar_lea.vmem %s1, %s211
        $region32: #{tpu_custom_call.1} parent=23 // pred_fallthru
          _
        // Predicated region
        $region33: #{tpu_custom_call.1} parent=23 // pred_check
          %p213 = pneg %p90
        $region34: #{tpu_custom_call.1} parent=23 // pred_check_branch
          %215 = sbr.rel (%p213) target = $region36
        $region35: #{tpu_custom_call.1} parent=23 // pred_region
          %s216 = sand.u32 %s80, 1
          %s217 = scalar_lea.sflag [#allocation3], %s216
          %s218 = sand.u32 %s80, 1
          %s219 = smul.addr %s218, 2
          %s220 = scalar_lea.vmem [#allocation2], %s219
          %s222 = ssub.s32 32, 32
          %223 = vsyncadd %s217, %s222
          %s224 = smul.addr %s18, 32
          %s225 = scalar_lea.hbm %s2, %s224
          %s227 = sshll.u32 %s220, 4
          %s228 = int_to_ptr.vmem [resolvable:$true] %s227
          %230 = dma.hbm_to_vmem [thread:$0]  %s225, 32, %s228, %s217
        $region36: #{tpu_custom_call.1} parent=23 // pred_fallthru
          _
      $region24: #{tpu_custom_call.1} parent=5 // pred_fallthru
        _
      %p231 = scmp.le.s32.totalorder 1, %s18
      %p232 = scmp.lt.s32.totalorder %s18, 3
      %p233 = pnand %p231, %p232
      %p234 = pneg %p233
      // Predicated region
      $region37: #{tpu_custom_call.1} parent=5 // pred_check
        _
      $region38: #{tpu_custom_call.1} parent=5 // pred_check_branch
        %236 = sbr.rel (%p233) target = $region40
      $region39: #{tpu_custom_call.1} parent=5 // pred_region
        %s237 = ssub.s32 %s18, 1
        %s238 = sand.u32 %s83, 1
        %s239 = scalar_lea.sflag [#allocation3], %s238
        %s240 = sand.u32 %s83, 1
        %s241 = smul.addr %s240, 2
        %s242 = scalar_lea.vmem [#allocation2], %s241
        // Predicated region
        $region41: #{tpu_custom_call.1} parent=39 // pred_check
          %p243 = pneg %p96
        $region42: #{tpu_custom_call.1} parent=39 // pred_check_branch
          %245 = sbr.rel (%p243) target = $region44
        $region43: #{tpu_custom_call.1} parent=39 // pred_region
          %246 = dma.done %s239, 32
        $region44: #{tpu_custom_call.1} parent=39 // pred_fallthru
          _
        // Predicated region
        $region45: #{tpu_custom_call.1} parent=39 // pred_check
          %p247 = pneg %p117
        $region46: #{tpu_custom_call.1} parent=39 // pred_check_branch
          %249 = sbr.rel (%p247) target = $region48
        $region47: #{tpu_custom_call.1} parent=39 // pred_region
          %250 = dma.done [#allocation6], 16384
        $region48: #{tpu_custom_call.1} parent=39 // pred_fallthru
          _
        %p251 = scmp.lt.s32.totalorder %s23, 1
        %s252 = scalar_select %p251, %s23, 1
        %s253 = smul.addr %s252, 8
        %s254 = scalar_lea.vmem %s0, %s253
        %p255 = pneg %p44
        %p256 = pneg %p41
        %p257 = scmp.lt.s32.totalorder %s23, 1
        %s258 = scalar_select %p257, %s23, 1
        %s259 = smul.addr %s258, 8
        %s260 = scalar_lea.vmem %s1, %s259
        %p261 = pneg %p70
        %p262 = pneg %p67
        %s263 = sand.u32 %s83, 1
        %s264 = scalar_lea.sflag [#allocation3], %s263
        %s265 = sand.u32 %s83, 1
        %s266 = smul.addr %s265, 2
        %s267 = scalar_lea.vmem [#allocation2], %s266
        %p268 = pneg %p96
        %p269 = pneg %p93
        %p270 = pneg %p117
        %p271 = pneg %p114
        %p272 = pneg %p138
        %p273 = pneg %p135
        %p274 = pneg %p164
        %p275 = pneg %p161
        %s276 = sand.u32 %s151, 1
        %s277 = scalar_lea.sflag [#allocation4], %s276
        %s278 = sand.u32 %s151, 1
        %s279 = smul.addr %s278, 8
        %s280 = scalar_lea.vmem [#allocation7], %s279
        %p281 = scmp.lt.s32.totalorder %s23, 1
        %s282 = scalar_select %p281, %s23, 1
        %s283 = smul.addr %s282, 8
        %s284 = scalar_lea.vmem %s0, %s283
        %p285 = scmp.lt.s32.totalorder %s23, 1
        %s286 = scalar_select %p285, %s23, 1
        %s287 = smul.addr %s286, 8
        %s288 = scalar_lea.vmem %s1, %s287
        %v289 = vld [vmem:[%s284] sm:$0xff]
        %v290 = vld [vmem:[#allocation5] sm:$0xff]
        %v291 = vld [vmem:[#allocation5 + $0x8] sm:$0xff]
        %v292 = vld [vmem:[#allocation5 + $0x10] sm:$0xff]
        %v293 = vld [vmem:[#allocation5 + $0x18] sm:$0xff]
        %v294 = vld [vmem:[#allocation5 + $0x20] sm:$0xff]
        %v295 = vld [vmem:[#allocation5 + $0x28] sm:$0xff]
        %v296 = vld [vmem:[#allocation5 + $0x30] sm:$0xff]
        %v297 = vld [vmem:[#allocation5 + $0x38] sm:$0xff]
        %v298 = vld [vmem:[#allocation5 + $0x40] sm:$0xff]
        %v299 = vld [vmem:[#allocation5 + $0x48] sm:$0xff]
        %v300 = vld [vmem:[#allocation5 + $0x50] sm:$0xff]
        %v301 = vld [vmem:[#allocation5 + $0x58] sm:$0xff]
        %v302 = vld [vmem:[#allocation5 + $0x60] sm:$0xff]
        %v303 = vld [vmem:[#allocation5 + $0x68] sm:$0xff]
        %v304 = vld [vmem:[#allocation5 + $0x70] sm:$0xff]
        %v305 = vld [vmem:[#allocation5 + $0x78] sm:$0xff]
        %v306 = vld [vmem:[%s4] sm:$0x1]
        %v307 = vlaneseq
        %v308 = vshrl.u32 %v307, 7
        %v309 = vsub.s32 0, %v308
        %v310 = vrot.slane %v306, %v309
        %311 = vmatprep.subr.mxu0 0.0
        %312 = vmatpush1.msra.mxu0 %v290
        %313 = vmatprep.subr.mxu0 0.0
        %314 = vmatpush1.msra.mxu0 %v291
        %315 = vmatprep.subr.mxu0 0.0
        %316 = vmatpush1.msra.mxu0 %v292
        %317 = vmatprep.subr.mxu0 0.0
        %318 = vmatpush1.msra.mxu0 %v293
        %319 = vmatprep.subr.mxu0 0.0
        %320 = vmatpush1.msra.mxu0 %v294
        %321 = vmatprep.subr.mxu0 0.0
        %322 = vmatpush1.msra.mxu0 %v295
        %323 = vmatprep.subr.mxu0 0.0
        %324 = vmatpush1.msra.mxu0 %v296
        %325 = vmatprep.subr.mxu0 0.0
        %326 = vmatpush1.msra.mxu0 %v297
        %327 = vmatprep.subr.mxu0 0.0
        %328 = vmatpush1.msra.mxu0 %v298
        %329 = vmatprep.subr.mxu0 0.0
        %330 = vmatpush1.msra.mxu0 %v299
        %331 = vmatprep.subr.mxu0 0.0
        %332 = vmatpush1.msra.mxu0 %v300
        %333 = vmatprep.subr.mxu0 0.0
        %334 = vmatpush1.msra.mxu0 %v301
        %335 = vmatprep.subr.mxu0 0.0
        %336 = vmatpush1.msra.mxu0 %v302
        %337 = vmatprep.subr.mxu0 0.0
        %338 = vmatpush1.msra.mxu0 %v303
        %339 = vmatprep.subr.mxu0 0.0
        %340 = vmatpush1.msra.mxu0 %v304
        %341 = vmatprep.subr.mxu0 0.0
        %342 = vmatpush1.msra.mxu0 %v305
        %343 = vmatprep.subr.mxu0 0.0
        %344 = vmatpush1.msra.mxu0 0.0
        %345 = vmatprep.subr.mxu0 0.0
        %346 = vmatpush1.msra.mxu0 0.0
        %347 = vmatprep.subr.mxu0 0.0
        %348 = vmatpush1.msra.mxu0 0.0
        %349 = vmatprep.subr.mxu0 0.0
        %350 = vmatpush1.msra.mxu0 0.0
        %351 = vmatprep.subr.mxu0 0.0
        %352 = vmatpush1.msra.mxu0 0.0
        %353 = vmatprep.subr.mxu0 0.0
        %354 = vmatpush1.msra.mxu0 0.0
        %355 = vmatprep.subr.mxu0 0.0
        %356 = vmatpush1.msra.mxu0 0.0
        %357 = vmatprep.subr.mxu0 0.0
        %358 = vmatpush1.msra.mxu0 0.0
        %359 = vmatprep.subr.mxu0 0.0
        %360 = vmatpush1.msra.mxu0 0.0
        %361 = vmatprep.subr.mxu0 0.0
        %362 = vmatpush1.msra.mxu0 0.0
        %363 = vmatprep.subr.mxu0 0.0
        %364 = vmatpush1.msra.mxu0 0.0
        %365 = vmatprep.subr.mxu0 0.0
        %366 = vmatpush1.msra.mxu0 0.0
        %367 = vmatprep.subr.mxu0 0.0
        %368 = vmatpush1.msra.mxu0 0.0
        %369 = vmatprep.subr.mxu0 0.0
        %370 = vmatpush1.msra.mxu0 0.0
        %371 = vmatprep.subr.mxu0 0.0
        %372 = vmatpush1.msra.mxu0 0.0
        %373 = vmatprep.subr.mxu0 0.0
        %374 = vmatpush1.msra.mxu0 0.0
        %375 = vmatprep.mubr.f32.mxu0 0.0
        %376 = vmatmul.mubr.f32.gmra.mrb[0].mxu0 %v289
        %v377 = vpop.f32.mrb[0].mxu0
        %v378 = vadd.f32 %v310, %v377
        %v379 = vpop.f32.mrb[0].mxu0
        %380 = vdwg.mxu0
        %v381 = vmax.f32 %v378, 0.0
        %v382 = vld [vmem:[#allocation5 + $0x80] sm:$0xff]
        %v383 = vld [vmem:[#allocation5 + $0x88] sm:$0xff]
        %v384 = vld [vmem:[#allocation5 + $0x90] sm:$0xff]
        %v385 = vld [vmem:[#allocation5 + $0x98] sm:$0xff]
        %v386 = vld [vmem:[#allocation5 + $0xa0] sm:$0xff]
        %v387 = vld [vmem:[#allocation5 + $0xa8] sm:$0xff]
        %v388 = vld [vmem:[#allocation5 + $0xb0] sm:$0xff]
        %v389 = vld [vmem:[#allocation5 + $0xb8] sm:$0xff]
        %v390 = vld [vmem:[#allocation5 + $0xc0] sm:$0xff]
        %v391 = vld [vmem:[#allocation5 + $0xc8] sm:$0xff]
        %v392 = vld [vmem:[#allocation5 + $0xd0] sm:$0xff]
        %v393 = vld [vmem:[#allocation5 + $0xd8] sm:$0xff]
        %v394 = vld [vmem:[#allocation5 + $0xe0] sm:$0xff]
        %v395 = vld [vmem:[#allocation5 + $0xe8] sm:$0xff]
        %v396 = vld [vmem:[#allocation5 + $0xf0] sm:$0xff]
        %v397 = vld [vmem:[#allocation5 + $0xf8] sm:$0xff]
        %v398 = vld [vmem:[%s4 + $0x1] sm:$0x1]
        %v399 = vlaneseq
        %v400 = vshrl.u32 %v399, 7
        %v401 = vsub.s32 0, %v400
        %v402 = vrot.slane %v398, %v401
        %403 = vmatprep.subr.mxu0 0.0
        %404 = vmatpush1.msra.mxu0 %v382
        %405 = vmatprep.subr.mxu0 0.0
        %406 = vmatpush1.msra.mxu0 %v383
        %407 = vmatprep.subr.mxu0 0.0
        %408 = vmatpush1.msra.mxu0 %v384
        %409 = vmatprep.subr.mxu0 0.0
        %410 = vmatpush1.msra.mxu0 %v385
        %411 = vmatprep.subr.mxu0 0.0
        %412 = vmatpush1.msra.mxu0 %v386
        %413 = vmatprep.subr.mxu0 0.0
        %414 = vmatpush1.msra.mxu0 %v387
        %415 = vmatprep.subr.mxu0 0.0
        %416 = vmatpush1.msra.mxu0 %v388
        %417 = vmatprep.subr.mxu0 0.0
        %418 = vmatpush1.msra.mxu0 %v389
        %419 = vmatprep.subr.mxu0 0.0
        %420 = vmatpush1.msra.mxu0 %v390
        %421 = vmatprep.subr.mxu0 0.0
        %422 = vmatpush1.msra.mxu0 %v391
        %423 = vmatprep.subr.mxu0 0.0
        %424 = vmatpush1.msra.mxu0 %v392
        %425 = vmatprep.subr.mxu0 0.0
        %426 = vmatpush1.msra.mxu0 %v393
        %427 = vmatprep.subr.mxu0 0.0
        %428 = vmatpush1.msra.mxu0 %v394
        %429 = vmatprep.subr.mxu0 0.0
        %430 = vmatpush1.msra.mxu0 %v395
        %431 = vmatprep.subr.mxu0 0.0
        %432 = vmatpush1.msra.mxu0 %v396
        %433 = vmatprep.subr.mxu0 0.0
        %434 = vmatpush1.msra.mxu0 %v397
        %435 = vmatprep.subr.mxu0 0.0
        %436 = vmatpush1.msra.mxu0 0.0
        %437 = vmatprep.subr.mxu0 0.0
        %438 = vmatpush1.msra.mxu0 0.0
        %439 = vmatprep.subr.mxu0 0.0
        %440 = vmatpush1.msra.mxu0 0.0
        %441 = vmatprep.subr.mxu0 0.0
        %442 = vmatpush1.msra.mxu0 0.0
        %443 = vmatprep.subr.mxu0 0.0
        %444 = vmatpush1.msra.mxu0 0.0
        %445 = vmatprep.subr.mxu0 0.0
        %446 = vmatpush1.msra.mxu0 0.0
        %447 = vmatprep.subr.mxu0 0.0
        %448 = vmatpush1.msra.mxu0 0.0
        %449 = vmatprep.subr.mxu0 0.0
        %450 = vmatpush1.msra.mxu0 0.0
        %451 = vmatprep.subr.mxu0 0.0
        %452 = vmatpush1.msra.mxu0 0.0
        %453 = vmatprep.subr.mxu0 0.0
        %454 = vmatpush1.msra.mxu0 0.0
        %455 = vmatprep.subr.mxu0 0.0
        %456 = vmatpush1.msra.mxu0 0.0
        %457 = vmatprep.subr.mxu0 0.0
        %458 = vmatpush1.msra.mxu0 0.0
        %459 = vmatprep.subr.mxu0 0.0
        %460 = vmatpush1.msra.mxu0 0.0
        %461 = vmatprep.subr.mxu0 0.0
        %462 = vmatpush1.msra.mxu0 0.0
        %463 = vmatprep.subr.mxu0 0.0
        %464 = vmatpush1.msra.mxu0 0.0
        %465 = vmatprep.subr.mxu0 0.0
        %466 = vmatpush1.msra.mxu0 0.0
        %467 = vmatprep.mubr.f32.mxu0 0.0
        %468 = vmatmul.mubr.f32.gmra.mrb[0].mxu0 %v381
        %v469 = vpop.f32.mrb[0].mxu0
        %v470 = vadd.f32 %v402, %v469
        %v471 = vpop.f32.mrb[0].mxu0
        %472 = vdwg.mxu0
        %v473 = vlaneseq
        %v474 = vand.u32 %v473, 127
        %vm475 = vcmp.eq.s32.totalorder %v474, 8
        %v476 = vsel %vm475, 1.0, 0.0
        %v477 = vadd.f32 %v470, %v476
        %v478 = vld [vmem:[%s288] sm:$0xff]
        %v479 = vld [vmem:[%s242] sm:$0x3]
        %481 = vset.pattern.permute.xlu0 0
        %482 = vperm.xlu0 %481, %v478
        %v483 = vpop.permute.xlu0 %482
        %v485 = vlaneseq
        %v486 = vshrl.u32 %v485, 7
        %v487 = vsub.s32 0, %v486
        %v488 = vrot.slane %v479, %v487
        %v489 = vsub.f32 %v483, %v488
        %v490 = vmul.f32 %v489, %v489
        %491 = vset.pattern.permute.xlu0 1
        %492 = vperm.xlu0 %491, %v478
        %v493 = vpop.permute.xlu0 %492
        %v495 = vlaneseq
        %v496 = vshrl.u32 %v495, 7
        %v497 = vsub.s32 1, %v496
        %v498 = vrot.slane %v479, %v497
        %v499 = vsub.f32 %v493, %v498
        %v500 = vmul.f32 %v499, %v499
        %v501 = vadd.f32 %v490, %v500
        %v502 = vlaneseq
        %v503 = vshrl.u32 %v502, 7
        %vm504 = vcmp.lt.f32.partialorder %v501, 1.0
        %vm505 = vcmp.ne.s32.totalorder %v503, %v474
        %vm506 = vmand %vm504, %vm505
        %v507 = vsel %vm506, 1.0, 0.0
        %vm508 = vcmask 64512
        %v510 = vsel %vm508, %v507, 0
        %512 = vmatprep.subr.mxu0 0.0
        %513 = vmatpush1.msra.mxu0 %v477
        %514 = vmatprep.subr.mxu0 0.0
        %515 = vmatpush1.msra.mxu0 0.0
        %516 = vmatprep.subr.mxu0 0.0
        %517 = vmatpush1.msra.mxu0 0.0
        %518 = vmatprep.subr.mxu0 0.0
        %519 = vmatpush1.msra.mxu0 0.0
        %520 = vmatprep.subr.mxu0 0.0
        %521 = vmatpush1.msra.mxu0 0.0
        %522 = vmatprep.subr.mxu0 0.0
        %523 = vmatpush1.msra.mxu0 0.0
        %524 = vmatprep.subr.mxu0 0.0
        %525 = vmatpush1.msra.mxu0 0.0
        %526 = vmatprep.subr.mxu0 0.0
        %527 = vmatpush1.msra.mxu0 0.0
        %528 = vmatprep.subr.mxu0 0.0
        %529 = vmatpush1.msra.mxu0 0.0
        %530 = vmatprep.subr.mxu0 0.0
        %531 = vmatpush1.msra.mxu0 0.0
        %532 = vmatprep.subr.mxu0 0.0
        %533 = vmatpush1.msra.mxu0 0.0
        %534 = vmatprep.subr.mxu0 0.0
        %535 = vmatpush1.msra.mxu0 0.0
        %536 = vmatprep.subr.mxu0 0.0
        %537 = vmatpush1.msra.mxu0 0.0
        %538 = vmatprep.subr.mxu0 0.0
        %539 = vmatpush1.msra.mxu0 0.0
        %540 = vmatprep.subr.mxu0 0.0
        %541 = vmatpush1.msra.mxu0 0.0
        %542 = vmatprep.subr.mxu0 0.0
        %543 = vmatpush1.msra.mxu0 0.0
        %544 = vmatprep.subr.mxu0 0.0
        %545 = vmatpush1.msra.mxu0 0.0
        %546 = vmatprep.subr.mxu0 0.0
        %547 = vmatpush1.msra.mxu0 0.0
        %548 = vmatprep.subr.mxu0 0.0
        %549 = vmatpush1.msra.mxu0 0.0
        %550 = vmatprep.subr.mxu0 0.0
        %551 = vmatpush1.msra.mxu0 0.0
        %552 = vmatprep.subr.mxu0 0.0
        %553 = vmatpush1.msra.mxu0 0.0
        %554 = vmatprep.subr.mxu0 0.0
        %555 = vmatpush1.msra.mxu0 0.0
        %556 = vmatprep.subr.mxu0 0.0
        %557 = vmatpush1.msra.mxu0 0.0
        %558 = vmatprep.subr.mxu0 0.0
        %559 = vmatpush1.msra.mxu0 0.0
        %560 = vmatprep.subr.mxu0 0.0
        %561 = vmatpush1.msra.mxu0 0.0
        %562 = vmatprep.subr.mxu0 0.0
        %563 = vmatpush1.msra.mxu0 0.0
        %564 = vmatprep.subr.mxu0 0.0
        %565 = vmatpush1.msra.mxu0 0.0
        %566 = vmatprep.subr.mxu0 0.0
        %567 = vmatpush1.msra.mxu0 0.0
        %568 = vmatprep.subr.mxu0 0.0
        %569 = vmatpush1.msra.mxu0 0.0
        %570 = vmatprep.subr.mxu0 0.0
        %571 = vmatpush1.msra.mxu0 0.0
        %572 = vmatprep.subr.mxu0 0.0
        %573 = vmatpush1.msra.mxu0 0.0
        %574 = vmatprep.subr.mxu0 0.0
        %575 = vmatpush1.msra.mxu0 0.0
        %576 = vmatprep.mubr.f32.mxu0 0.0
        %577 = vmatmul.mubr.f32.gmra.mrb[0].mxu0 %v510
        %v578 = vpop.f32.mrb[0].mxu0
        %v579 = vadd.f32 0.0, %v578
        %v580 = vpop.f32.mrb[0].mxu0
        %581 = vdwg.mxu0
        %v582 = vmax.f32 %v579, 1.0
        %v583 = vrcp.pop %v582
        %585 = vset.pattern.permute.xlu0 8
        %586 = vperm.xlu0 %585, %v583
        %v587 = vpop.permute.xlu0 %586
        %v589 = vmul.f32 %v579, %v587
        %v590 = vld [vmem:[#allocation5 + $0x100] sm:$0xff]
        %v591 = vld [vmem:[#allocation5 + $0x108] sm:$0xff]
        %v592 = vld [vmem:[#allocation5 + $0x110] sm:$0xff]
        %v593 = vld [vmem:[#allocation5 + $0x118] sm:$0xff]
        %v594 = vld [vmem:[#allocation5 + $0x120] sm:$0xff]
        %v595 = vld [vmem:[#allocation5 + $0x128] sm:$0xff]
        %v596 = vld [vmem:[#allocation5 + $0x130] sm:$0xff]
        %v597 = vld [vmem:[#allocation5 + $0x138] sm:$0xff]
        %v598 = vld [vmem:[#allocation5 + $0x140] sm:$0xff]
        %v599 = vld [vmem:[#allocation5 + $0x148] sm:$0xff]
        %v600 = vld [vmem:[#allocation5 + $0x150] sm:$0xff]
        %v601 = vld [vmem:[#allocation5 + $0x158] sm:$0xff]
        %v602 = vld [vmem:[#allocation5 + $0x160] sm:$0xff]
        %v603 = vld [vmem:[#allocation5 + $0x168] sm:$0xff]
        %v604 = vld [vmem:[#allocation5 + $0x170] sm:$0xff]
        %v605 = vld [vmem:[#allocation5 + $0x178] sm:$0xff]
        %v606 = vld [vmem:[#allocation5 + $0x180] sm:$0xff]
        %v607 = vld [vmem:[#allocation5 + $0x188] sm:$0xff]
        %v608 = vld [vmem:[#allocation5 + $0x190] sm:$0xff]
        %v609 = vld [vmem:[#allocation5 + $0x198] sm:$0xff]
        %v610 = vld [vmem:[#allocation5 + $0x1a0] sm:$0xff]
        %v611 = vld [vmem:[#allocation5 + $0x1a8] sm:$0xff]
        %v612 = vld [vmem:[#allocation5 + $0x1b0] sm:$0xff]
        %v613 = vld [vmem:[#allocation5 + $0x1b8] sm:$0xff]
        %v614 = vld [vmem:[#allocation5 + $0x1c0] sm:$0xff]
        %v615 = vld [vmem:[#allocation5 + $0x1c8] sm:$0xff]
        %v616 = vld [vmem:[#allocation5 + $0x1d0] sm:$0xff]
        %v617 = vld [vmem:[#allocation5 + $0x1d8] sm:$0xff]
        %v618 = vld [vmem:[#allocation5 + $0x1e0] sm:$0xff]
        %v619 = vld [vmem:[#allocation5 + $0x1e8] sm:$0xff]
        %v620 = vld [vmem:[#allocation5 + $0x1f0] sm:$0xff]
        %v621 = vld [vmem:[#allocation5 + $0x1f8] sm:$0xff]
        %622 = vmatprep.subr.mxu0 0.0
        %623 = vmatpush1.msra.mxu0 %v606
        %624 = vmatprep.subr.mxu0 0.0
        %625 = vmatpush1.msra.mxu0 %v607
        %626 = vmatprep.subr.mxu0 0.0
        %627 = vmatpush1.msra.mxu0 %v608
        %628 = vmatprep.subr.mxu0 0.0
        %629 = vmatpush1.msra.mxu0 %v609
        %630 = vmatprep.subr.mxu0 0.0
        %631 = vmatpush1.msra.mxu0 %v610
        %632 = vmatprep.subr.mxu0 0.0
        %633 = vmatpush1.msra.mxu0 %v611
        %634 = vmatprep.subr.mxu0 0.0
        %635 = vmatpush1.msra.mxu0 %v612
        %636 = vmatprep.subr.mxu0 0.0
        %637 = vmatpush1.msra.mxu0 %v613
        %638 = vmatprep.subr.mxu0 0.0
        %639 = vmatpush1.msra.mxu0 %v614
        %640 = vmatprep.subr.mxu0 0.0
        %641 = vmatpush1.msra.mxu0 %v615
        %642 = vmatprep.subr.mxu0 0.0
        %643 = vmatpush1.msra.mxu0 %v616
        %644 = vmatprep.subr.mxu0 0.0
        %645 = vmatpush1.msra.mxu0 %v617
        %646 = vmatprep.subr.mxu0 0.0
        %647 = vmatpush1.msra.mxu0 %v618
        %648 = vmatprep.subr.mxu0 0.0
        %649 = vmatpush1.msra.mxu0 %v619
        %650 = vmatprep.subr.mxu0 0.0
        %651 = vmatpush1.msra.mxu0 %v620
        %652 = vmatprep.subr.mxu0 0.0
        %653 = vmatpush1.msra.mxu0 %v621
        %654 = vmatprep.subr.mxu0 0.0
        %655 = vmatpush1.msra.mxu0 0.0
        %656 = vmatprep.subr.mxu0 0.0
        %657 = vmatpush1.msra.mxu0 0.0
        %658 = vmatprep.subr.mxu0 0.0
        %659 = vmatpush1.msra.mxu0 0.0
        %660 = vmatprep.subr.mxu0 0.0
        %661 = vmatpush1.msra.mxu0 0.0
        %662 = vmatprep.subr.mxu0 0.0
        %663 = vmatpush1.msra.mxu0 0.0
        %664 = vmatprep.subr.mxu0 0.0
        %665 = vmatpush1.msra.mxu0 0.0
        %666 = vmatprep.subr.mxu0 0.0
        %667 = vmatpush1.msra.mxu0 0.0
        %668 = vmatprep.subr.mxu0 0.0
        %669 = vmatpush1.msra.mxu0 0.0
        %670 = vmatprep.subr.mxu0 0.0
        %671 = vmatpush1.msra.mxu0 0.0
        %672 = vmatprep.subr.mxu0 0.0
        %673 = vmatpush1.msra.mxu0 0.0
        %674 = vmatprep.subr.mxu0 0.0
        %675 = vmatpush1.msra.mxu0 0.0
        %676 = vmatprep.subr.mxu0 0.0
        %677 = vmatpush1.msra.mxu0 0.0
        %678 = vmatprep.subr.mxu0 0.0
        %679 = vmatpush1.msra.mxu0 0.0
        %680 = vmatprep.subr.mxu0 0.0
        %681 = vmatpush1.msra.mxu0 0.0
        %682 = vmatprep.subr.mxu0 0.0
        %683 = vmatpush1.msra.mxu0 0.0
        %684 = vmatprep.subr.mxu0 0.0
        %685 = vmatpush1.msra.mxu0 0.0
        %686 = vmatprep.mubr.f32.mxu0 0.0
        %687 = vmatmul.mubr.f32.gmra.mrb[0].mxu0 %v589
        %v688 = vpop.f32.mrb[0].mxu0
        %v689 = vadd.f32 0.0, %v688
        %v690 = vpop.f32.mrb[0].mxu0
        %691 = vdwg.mxu0
        %692 = vmatprep.subr.mxu0 0.0
        %693 = vmatpush1.msra.mxu0 %v590
        %694 = vmatprep.subr.mxu0 0.0
        %695 = vmatpush1.msra.mxu0 %v591
        %696 = vmatprep.subr.mxu0 0.0
        %697 = vmatpush1.msra.mxu0 %v592
        %698 = vmatprep.subr.mxu0 0.0
        %699 = vmatpush1.msra.mxu0 %v593
        %700 = vmatprep.subr.mxu0 0.0
        %701 = vmatpush1.msra.mxu0 %v594
        %702 = vmatprep.subr.mxu0 0.0
        %703 = vmatpush1.msra.mxu0 %v595
        %704 = vmatprep.subr.mxu0 0.0
        %705 = vmatpush1.msra.mxu0 %v596
        %706 = vmatprep.subr.mxu0 0.0
        %707 = vmatpush1.msra.mxu0 %v597
        %708 = vmatprep.subr.mxu0 0.0
        %709 = vmatpush1.msra.mxu0 %v598
        %710 = vmatprep.subr.mxu0 0.0
        %711 = vmatpush1.msra.mxu0 %v599
        %712 = vmatprep.subr.mxu0 0.0
        %713 = vmatpush1.msra.mxu0 %v600
        %714 = vmatprep.subr.mxu0 0.0
        %715 = vmatpush1.msra.mxu0 %v601
        %716 = vmatprep.subr.mxu0 0.0
        %717 = vmatpush1.msra.mxu0 %v602
        %718 = vmatprep.subr.mxu0 0.0
        %719 = vmatpush1.msra.mxu0 %v603
        %720 = vmatprep.subr.mxu0 0.0
        %721 = vmatpush1.msra.mxu0 %v604
        %722 = vmatprep.subr.mxu0 0.0
        %723 = vmatpush1.msra.mxu0 %v605
        %724 = vmatprep.subr.mxu0 0.0
        %725 = vmatpush1.msra.mxu0 0.0
        %726 = vmatprep.subr.mxu0 0.0
        %727 = vmatpush1.msra.mxu0 0.0
        %728 = vmatprep.subr.mxu0 0.0
        %729 = vmatpush1.msra.mxu0 0.0
        %730 = vmatprep.subr.mxu0 0.0
        %731 = vmatpush1.msra.mxu0 0.0
        %732 = vmatprep.subr.mxu0 0.0
        %733 = vmatpush1.msra.mxu0 0.0
        %734 = vmatprep.subr.mxu0 0.0
        %735 = vmatpush1.msra.mxu0 0.0
        %736 = vmatprep.subr.mxu0 0.0
        %737 = vmatpush1.msra.mxu0 0.0
        %738 = vmatprep.subr.mxu0 0.0
        %739 = vmatpush1.msra.mxu0 0.0
        %740 = vmatprep.subr.mxu0 0.0
        %741 = vmatpush1.msra.mxu0 0.0
        %742 = vmatprep.subr.mxu0 0.0
        %743 = vmatpush1.msra.mxu0 0.0
        %744 = vmatprep.subr.mxu0 0.0
        %745 = vmatpush1.msra.mxu0 0.0
        %746 = vmatprep.subr.mxu0 0.0
        %747 = vmatpush1.msra.mxu0 0.0
        %748 = vmatprep.subr.mxu0 0.0
        %749 = vmatpush1.msra.mxu0 0.0
        %750 = vmatprep.subr.mxu0 0.0
        %751 = vmatpush1.msra.mxu0 0.0
        %752 = vmatprep.subr.mxu0 0.0
        %753 = vmatpush1.msra.mxu0 0.0
        %754 = vmatprep.subr.mxu0 0.0
        %755 = vmatpush1.msra.mxu0 0.0
        %756 = vmatprep.mubr.f32.mxu0 0.0
        %757 = vmatmul.mubr.f32.gmra.mrb[0].mxu0 %v477
        %v758 = vpop.f32.mrb[0].mxu0
        %v759 = vadd.f32 %v689, %v758
        %v760 = vpop.f32.mrb[0].mxu0
        %761 = vdwg.mxu0
        %v762 = vld [vmem:[%s4 + $0x2] sm:$0x1]
        %v763 = vlaneseq
        %v764 = vshrl.u32 %v763, 7
        %v765 = vsub.s32 0, %v764
        %v766 = vrot.slane %v762, %v765
        %v767 = vadd.f32 %v759, %v766
        %v768 = vmax.f32 %v767, 0.0
        %v769 = vld [vmem:[#allocation5 + $0x200] sm:$0xff]
        %v770 = vld [vmem:[#allocation5 + $0x208] sm:$0xff]
        %v771 = vld [vmem:[#allocation5 + $0x210] sm:$0xff]
        %v772 = vld [vmem:[#allocation5 + $0x218] sm:$0xff]
        %v773 = vld [vmem:[#allocation5 + $0x220] sm:$0xff]
        %v774 = vld [vmem:[#allocation5 + $0x228] sm:$0xff]
        %v775 = vld [vmem:[#allocation5 + $0x230] sm:$0xff]
        %v776 = vld [vmem:[#allocation5 + $0x238] sm:$0xff]
        %v777 = vld [vmem:[#allocation5 + $0x240] sm:$0xff]
        %v778 = vld [vmem:[#allocation5 + $0x248] sm:$0xff]
        %v779 = vld [vmem:[#allocation5 + $0x250] sm:$0xff]
        %v780 = vld [vmem:[#allocation5 + $0x258] sm:$0xff]
        %v781 = vld [vmem:[#allocation5 + $0x260] sm:$0xff]
        %v782 = vld [vmem:[#allocation5 + $0x268] sm:$0xff]
        %v783 = vld [vmem:[#allocation5 + $0x270] sm:$0xff]
        %v784 = vld [vmem:[#allocation5 + $0x278] sm:$0xff]
        %v785 = vld [vmem:[%s4 + $0x3] sm:$0x1]
        %v786 = vlaneseq
        %v787 = vshrl.u32 %v786, 7
        %v788 = vsub.s32 0, %v787
        %v789 = vrot.slane %v785, %v788
        %790 = vmatprep.subr.mxu0 0.0
        %791 = vmatpush1.msra.mxu0 %v769
        %792 = vmatprep.subr.mxu0 0.0
        %793 = vmatpush1.msra.mxu0 %v770
        %794 = vmatprep.subr.mxu0 0.0
        %795 = vmatpush1.msra.mxu0 %v771
        %796 = vmatprep.subr.mxu0 0.0
        %797 = vmatpush1.msra.mxu0 %v772
        %798 = vmatprep.subr.mxu0 0.0
        %799 = vmatpush1.msra.mxu0 %v773
        %800 = vmatprep.subr.mxu0 0.0
        %801 = vmatpush1.msra.mxu0 %v774
        %802 = vmatprep.subr.mxu0 0.0
        %803 = vmatpush1.msra.mxu0 %v775
        %804 = vmatprep.subr.mxu0 0.0
        %805 = vmatpush1.msra.mxu0 %v776
        %806 = vmatprep.subr.mxu0 0.0
        %807 = vmatpush1.msra.mxu0 %v777
        %808 = vmatprep.subr.mxu0 0.0
        %809 = vmatpush1.msra.mxu0 %v778
        %810 = vmatprep.subr.mxu0 0.0
        %811 = vmatpush1.msra.mxu0 %v779
        %812 = vmatprep.subr.mxu0 0.0
        %813 = vmatpush1.msra.mxu0 %v780
        %814 = vmatprep.subr.mxu0 0.0
        %815 = vmatpush1.msra.mxu0 %v781
        %816 = vmatprep.subr.mxu0 0.0
        %817 = vmatpush1.msra.mxu0 %v782
        %818 = vmatprep.subr.mxu0 0.0
        %819 = vmatpush1.msra.mxu0 %v783
        %820 = vmatprep.subr.mxu0 0.0
        %821 = vmatpush1.msra.mxu0 %v784
        %822 = vmatprep.subr.mxu0 0.0
        %823 = vmatpush1.msra.mxu0 0.0
        %824 = vmatprep.subr.mxu0 0.0
        %825 = vmatpush1.msra.mxu0 0.0
        %826 = vmatprep.subr.mxu0 0.0
        %827 = vmatpush1.msra.mxu0 0.0
        %828 = vmatprep.subr.mxu0 0.0
        %829 = vmatpush1.msra.mxu0 0.0
        %830 = vmatprep.subr.mxu0 0.0
        %831 = vmatpush1.msra.mxu0 0.0
        %832 = vmatprep.subr.mxu0 0.0
        %833 = vmatpush1.msra.mxu0 0.0
        %834 = vmatprep.subr.mxu0 0.0
        %835 = vmatpush1.msra.mxu0 0.0
        %836 = vmatprep.subr.mxu0 0.0
        %837 = vmatpush1.msra.mxu0 0.0
        %838 = vmatprep.subr.mxu0 0.0
        %839 = vmatpush1.msra.mxu0 0.0
        %840 = vmatprep.subr.mxu0 0.0
        %841 = vmatpush1.msra.mxu0 0.0
        %842 = vmatprep.subr.mxu0 0.0
        %843 = vmatpush1.msra.mxu0 0.0
        %844 = vmatprep.subr.mxu0 0.0
        %845 = vmatpush1.msra.mxu0 0.0
        %846 = vmatprep.subr.mxu0 0.0
        %847 = vmatpush1.msra.mxu0 0.0
        %848 = vmatprep.subr.mxu0 0.0
        %849 = vmatpush1.msra.mxu0 0.0
        %850 = vmatprep.subr.mxu0 0.0
        %851 = vmatpush1.msra.mxu0 0.0
        %852 = vmatprep.subr.mxu0 0.0
        %853 = vmatpush1.msra.mxu0 0.0
        %854 = vmatprep.mubr.f32.mxu0 0.0
        %855 = vmatmul.mubr.f32.gmra.mrb[0].mxu0 %v768
        %v856 = vpop.f32.mrb[0].mxu0
        %v857 = vadd.f32 %v789, %v856
        %v858 = vpop.f32.mrb[0].mxu0
        %859 = vdwg.mxu0
        %v860 = vld [vmem:[#allocation5 + $0x280] sm:$0xff]
        %v861 = vld [vmem:[#allocation5 + $0x288] sm:$0xff]
        %v862 = vld [vmem:[#allocation5 + $0x290] sm:$0xff]
        %v863 = vld [vmem:[#allocation5 + $0x298] sm:$0xff]
        %v864 = vld [vmem:[#allocation5 + $0x2a0] sm:$0xff]
        %v865 = vld [vmem:[#allocation5 + $0x2a8] sm:$0xff]
        %v866 = vld [vmem:[#allocation5 + $0x2b0] sm:$0xff]
        %v867 = vld [vmem:[#allocation5 + $0x2b8] sm:$0xff]
        %v868 = vld [vmem:[#allocation5 + $0x2c0] sm:$0xff]
        %v869 = vld [vmem:[#allocation5 + $0x2c8] sm:$0xff]
        %v870 = vld [vmem:[#allocation5 + $0x2d0] sm:$0xff]
        %v871 = vld [vmem:[#allocation5 + $0x2d8] sm:$0xff]
        %v872 = vld [vmem:[#allocation5 + $0x2e0] sm:$0xff]
        %v873 = vld [vmem:[#allocation5 + $0x2e8] sm:$0xff]
        %v874 = vld [vmem:[#allocation5 + $0x2f0] sm:$0xff]
        %v875 = vld [vmem:[#allocation5 + $0x2f8] sm:$0xff]
        %v876 = vld [vmem:[#allocation5 + $0x300] sm:$0xff]
        %v877 = vld [vmem:[#allocation5 + $0x308] sm:$0xff]
        %v878 = vld [vmem:[#allocation5 + $0x310] sm:$0xff]
        %v879 = vld [vmem:[#allocation5 + $0x318] sm:$0xff]
        %v880 = vld [vmem:[#allocation5 + $0x320] sm:$0xff]
        %v881 = vld [vmem:[#allocation5 + $0x328] sm:$0xff]
        %v882 = vld [vmem:[#allocation5 + $0x330] sm:$0xff]
        %v883 = vld [vmem:[#allocation5 + $0x338] sm:$0xff]
        %v884 = vld [vmem:[#allocation5 + $0x340] sm:$0xff]
        %v885 = vld [vmem:[#allocation5 + $0x348] sm:$0xff]
        %v886 = vld [vmem:[#allocation5 + $0x350] sm:$0xff]
        %v887 = vld [vmem:[#allocation5 + $0x358] sm:$0xff]
        %v888 = vld [vmem:[#allocation5 + $0x360] sm:$0xff]
        %v889 = vld [vmem:[#allocation5 + $0x368] sm:$0xff]
        %v890 = vld [vmem:[#allocation5 + $0x370] sm:$0xff]
        %v891 = vld [vmem:[#allocation5 + $0x378] sm:$0xff]
        %892 = vmatprep.subr.mxu0 0.0
        %893 = vmatpush1.msra.mxu0 %v876
        %894 = vmatprep.subr.mxu0 0.0
        %895 = vmatpush1.msra.mxu0 %v877
        %896 = vmatprep.subr.mxu0 0.0
        %897 = vmatpush1.msra.mxu0 %v878
        %898 = vmatprep.subr.mxu0 0.0
        %899 = vmatpush1.msra.mxu0 %v879
        %900 = vmatprep.subr.mxu0 0.0
        %901 = vmatpush1.msra.mxu0 %v880
        %902 = vmatprep.subr.mxu0 0.0
        %903 = vmatpush1.msra.mxu0 %v881
        %904 = vmatprep.subr.mxu0 0.0
        %905 = vmatpush1.msra.mxu0 %v882
        %906 = vmatprep.subr.mxu0 0.0
        %907 = vmatpush1.msra.mxu0 %v883
        %908 = vmatprep.subr.mxu0 0.0
        %909 = vmatpush1.msra.mxu0 %v884
        %910 = vmatprep.subr.mxu0 0.0
        %911 = vmatpush1.msra.mxu0 %v885
        %912 = vmatprep.subr.mxu0 0.0
        %913 = vmatpush1.msra.mxu0 %v886
        %914 = vmatprep.subr.mxu0 0.0
        %915 = vmatpush1.msra.mxu0 %v887
        %916 = vmatprep.subr.mxu0 0.0
        %917 = vmatpush1.msra.mxu0 %v888
        %918 = vmatprep.subr.mxu0 0.0
        %919 = vmatpush1.msra.mxu0 %v889
        %920 = vmatprep.subr.mxu0 0.0
        %921 = vmatpush1.msra.mxu0 %v890
        %922 = vmatprep.subr.mxu0 0.0
        %923 = vmatpush1.msra.mxu0 %v891
        %924 = vmatprep.subr.mxu0 0.0
        %925 = vmatpush1.msra.mxu0 0.0
        %926 = vmatprep.subr.mxu0 0.0
        %927 = vmatpush1.msra.mxu0 0.0
        %928 = vmatprep.subr.mxu0 0.0
        %929 = vmatpush1.msra.mxu0 0.0
        %930 = vmatprep.subr.mxu0 0.0
        %931 = vmatpush1.msra.mxu0 0.0
        %932 = vmatprep.subr.mxu0 0.0
        %933 = vmatpush1.msra.mxu0 0.0
        %934 = vmatprep.subr.mxu0 0.0
        %935 = vmatpush1.msra.mxu0 0.0
        %936 = vmatprep.subr.mxu0 0.0
        %937 = vmatpush1.msra.mxu0 0.0
        %938 = vmatprep.subr.mxu0 0.0
        %939 = vmatpush1.msra.mxu0 0.0
        %940 = vmatprep.subr.mxu0 0.0
        %941 = vmatpush1.msra.mxu0 0.0
        %942 = vmatprep.subr.mxu0 0.0
        %943 = vmatpush1.msra.mxu0 0.0
        %944 = vmatprep.subr.mxu0 0.0
        %945 = vmatpush1.msra.mxu0 0.0
        %946 = vmatprep.subr.mxu0 0.0
        %947 = vmatpush1.msra.mxu0 0.0
        %948 = vmatprep.subr.mxu0 0.0
        %949 = vmatpush1.msra.mxu0 0.0
        %950 = vmatprep.subr.mxu0 0.0
        %951 = vmatpush1.msra.mxu0 0.0
        %952 = vmatprep.subr.mxu0 0.0
        %953 = vmatpush1.msra.mxu0 0.0
        %954 = vmatprep.subr.mxu0 0.0
        %955 = vmatpush1.msra.mxu0 0.0
        %956 = vmatprep.mubr.f32.mxu0 0.0
        %957 = vmatmul.mubr.f32.gmra.mrb[0].mxu0 %v857
        %v958 = vpop.f32.mrb[0].mxu0
        %v959 = vadd.f32 0.0, %v958
        %v960 = vpop.f32.mrb[0].mxu0
        %961 = vdwg.mxu0
        %962 = vmatprep.subr.mxu0 0.0
        %963 = vmatpush1.msra.mxu0 %v860
        %964 = vmatprep.subr.mxu0 0.0
        %965 = vmatpush1.msra.mxu0 %v861
        %966 = vmatprep.subr.mxu0 0.0
        %967 = vmatpush1.msra.mxu0 %v862
        %968 = vmatprep.subr.mxu0 0.0
        %969 = vmatpush1.msra.mxu0 %v863
        %970 = vmatprep.subr.mxu0 0.0
        %971 = vmatpush1.msra.mxu0 %v864
        %972 = vmatprep.subr.mxu0 0.0
        %973 = vmatpush1.msra.mxu0 %v865
        %974 = vmatprep.subr.mxu0 0.0
        %975 = vmatpush1.msra.mxu0 %v866
        %976 = vmatprep.subr.mxu0 0.0
        %977 = vmatpush1.msra.mxu0 %v867
        %978 = vmatprep.subr.mxu0 0.0
        %979 = vmatpush1.msra.mxu0 %v868
        %980 = vmatprep.subr.mxu0 0.0
        %981 = vmatpush1.msra.mxu0 %v869
        %982 = vmatprep.subr.mxu0 0.0
        %983 = vmatpush1.msra.mxu0 %v870
        %984 = vmatprep.subr.mxu0 0.0
        %985 = vmatpush1.msra.mxu0 %v871
        %986 = vmatprep.subr.mxu0 0.0
        %987 = vmatpush1.msra.mxu0 %v872
        %988 = vmatprep.subr.mxu0 0.0
        %989 = vmatpush1.msra.mxu0 %v873
        %990 = vmatprep.subr.mxu0 0.0
        %991 = vmatpush1.msra.mxu0 %v874
        %992 = vmatprep.subr.mxu0 0.0
        %993 = vmatpush1.msra.mxu0 %v875
        %994 = vmatprep.subr.mxu0 0.0
        %995 = vmatpush1.msra.mxu0 0.0
        %996 = vmatprep.subr.mxu0 0.0
        %997 = vmatpush1.msra.mxu0 0.0
        %998 = vmatprep.subr.mxu0 0.0
        %999 = vmatpush1.msra.mxu0 0.0
        %1000 = vmatprep.subr.mxu0 0.0
        %1001 = vmatpush1.msra.mxu0 0.0
        %1002 = vmatprep.subr.mxu0 0.0
        %1003 = vmatpush1.msra.mxu0 0.0
        %1004 = vmatprep.subr.mxu0 0.0
        %1005 = vmatpush1.msra.mxu0 0.0
        %1006 = vmatprep.subr.mxu0 0.0
        %1007 = vmatpush1.msra.mxu0 0.0
        %1008 = vmatprep.subr.mxu0 0.0
        %1009 = vmatpush1.msra.mxu0 0.0
        %1010 = vmatprep.subr.mxu0 0.0
        %1011 = vmatpush1.msra.mxu0 0.0
        %1012 = vmatprep.subr.mxu0 0.0
        %1013 = vmatpush1.msra.mxu0 0.0
        %1014 = vmatprep.subr.mxu0 0.0
        %1015 = vmatpush1.msra.mxu0 0.0
        %1016 = vmatprep.subr.mxu0 0.0
        %1017 = vmatpush1.msra.mxu0 0.0
        %1018 = vmatprep.subr.mxu0 0.0
        %1019 = vmatpush1.msra.mxu0 0.0
        %1020 = vmatprep.subr.mxu0 0.0
        %1021 = vmatpush1.msra.mxu0 0.0
        %1022 = vmatprep.subr.mxu0 0.0
        %1023 = vmatpush1.msra.mxu0 0.0
        %1024 = vmatprep.subr.mxu0 0.0
        %1025 = vmatpush1.msra.mxu0 0.0
        %1026 = vmatprep.mubr.f32.mxu0 0.0
        %1027 = vmatmul.mubr.f32.gmra.mrb[0].mxu0 %v289
        %v1028 = vpop.f32.mrb[0].mxu0
        %v1029 = vadd.f32 %v959, %v1028
        %v1030 = vpop.f32.mrb[0].mxu0
        %1031 = vdwg.mxu0
        %v1032 = vld [vmem:[%s4 + $0x4] sm:$0x1]
        %v1033 = vlaneseq
        %v1034 = vshrl.u32 %v1033, 7
        %v1035 = vsub.s32 0, %v1034
        %v1036 = vrot.slane %v1032, %v1035
        %v1037 = vadd.f32 %v1029, %v1036
        %v1038 = vmax.f32 %v1037, 0.0
        %v1039 = vld [vmem:[#allocation5 + $0x380] sm:$0xff]
        %v1040 = vld [vmem:[#allocation5 + $0x388] sm:$0xff]
        %v1041 = vld [vmem:[#allocation5 + $0x390] sm:$0xff]
        %v1042 = vld [vmem:[#allocation5 + $0x398] sm:$0xff]
        %v1043 = vld [vmem:[#allocation5 + $0x3a0] sm:$0xff]
        %v1044 = vld [vmem:[#allocation5 + $0x3a8] sm:$0xff]
        %v1045 = vld [vmem:[#allocation5 + $0x3b0] sm:$0xff]
        %v1046 = vld [vmem:[#allocation5 + $0x3b8] sm:$0xff]
        %v1047 = vld [vmem:[#allocation5 + $0x3c0] sm:$0xff]
        %v1048 = vld [vmem:[#allocation5 + $0x3c8] sm:$0xff]
        %v1049 = vld [vmem:[#allocation5 + $0x3d0] sm:$0xff]
        %v1050 = vld [vmem:[#allocation5 + $0x3d8] sm:$0xff]
        %v1051 = vld [vmem:[#allocation5 + $0x3e0] sm:$0xff]
        %v1052 = vld [vmem:[#allocation5 + $0x3e8] sm:$0xff]
        %v1053 = vld [vmem:[#allocation5 + $0x3f0] sm:$0xff]
        %v1054 = vld [vmem:[#allocation5 + $0x3f8] sm:$0xff]
        %v1055 = vld [vmem:[%s4 + $0x5] sm:$0x1]
        %v1056 = vlaneseq
        %v1057 = vshrl.u32 %v1056, 7
        %v1058 = vsub.s32 0, %v1057
        %v1059 = vrot.slane %v1055, %v1058
        %1060 = vmatprep.subr.mxu0 0.0
        %1061 = vmatpush1.msra.mxu0 %v1039
        %1062 = vmatprep.subr.mxu0 0.0
        %1063 = vmatpush1.msra.mxu0 %v1040
        %1064 = vmatprep.subr.mxu0 0.0
        %1065 = vmatpush1.msra.mxu0 %v1041
        %1066 = vmatprep.subr.mxu0 0.0
        %1067 = vmatpush1.msra.mxu0 %v1042
        %1068 = vmatprep.subr.mxu0 0.0
        %1069 = vmatpush1.msra.mxu0 %v1043
        %1070 = vmatprep.subr.mxu0 0.0
        %1071 = vmatpush1.msra.mxu0 %v1044
        %1072 = vmatprep.subr.mxu0 0.0
        %1073 = vmatpush1.msra.mxu0 %v1045
        %1074 = vmatprep.subr.mxu0 0.0
        %1075 = vmatpush1.msra.mxu0 %v1046
        %1076 = vmatprep.subr.mxu0 0.0
        %1077 = vmatpush1.msra.mxu0 %v1047
        %1078 = vmatprep.subr.mxu0 0.0
        %1079 = vmatpush1.msra.mxu0 %v1048
        %1080 = vmatprep.subr.mxu0 0.0
        %1081 = vmatpush1.msra.mxu0 %v1049
        %1082 = vmatprep.subr.mxu0 0.0
        %1083 = vmatpush1.msra.mxu0 %v1050
        %1084 = vmatprep.subr.mxu0 0.0
        %1085 = vmatpush1.msra.mxu0 %v1051
        %1086 = vmatprep.subr.mxu0 0.0
        %1087 = vmatpush1.msra.mxu0 %v1052
        %1088 = vmatprep.subr.mxu0 0.0
        %1089 = vmatpush1.msra.mxu0 %v1053
        %1090 = vmatprep.subr.mxu0 0.0
        %1091 = vmatpush1.msra.mxu0 %v1054
        %1092 = vmatprep.subr.mxu0 0.0
        %1093 = vmatpush1.msra.mxu0 0.0
        %1094 = vmatprep.subr.mxu0 0.0
        %1095 = vmatpush1.msra.mxu0 0.0
        %1096 = vmatprep.subr.mxu0 0.0
        %1097 = vmatpush1.msra.mxu0 0.0
        %1098 = vmatprep.subr.mxu0 0.0
        %1099 = vmatpush1.msra.mxu0 0.0
        %1100 = vmatprep.subr.mxu0 0.0
        %1101 = vmatpush1.msra.mxu0 0.0
        %1102 = vmatprep.subr.mxu0 0.0
        %1103 = vmatpush1.msra.mxu0 0.0
        %1104 = vmatprep.subr.mxu0 0.0
        %1105 = vmatpush1.msra.mxu0 0.0
        %1106 = vmatprep.subr.mxu0 0.0
        %1107 = vmatpush1.msra.mxu0 0.0
        %1108 = vmatprep.subr.mxu0 0.0
        %1109 = vmatpush1.msra.mxu0 0.0
        %1110 = vmatprep.subr.mxu0 0.0
        %1111 = vmatpush1.msra.mxu0 0.0
        %1112 = vmatprep.subr.mxu0 0.0
        %1113 = vmatpush1.msra.mxu0 0.0
        %1114 = vmatprep.subr.mxu0 0.0
        %1115 = vmatpush1.msra.mxu0 0.0
        %1116 = vmatprep.subr.mxu0 0.0
        %1117 = vmatpush1.msra.mxu0 0.0
        %1118 = vmatprep.subr.mxu0 0.0
        %1119 = vmatpush1.msra.mxu0 0.0
        %1120 = vmatprep.subr.mxu0 0.0
        %1121 = vmatpush1.msra.mxu0 0.0
        %1122 = vmatprep.subr.mxu0 0.0
        %1123 = vmatpush1.msra.mxu0 0.0
        %1124 = vmatprep.mubr.f32.mxu0 0.0
        %1125 = vmatmul.mubr.f32.gmra.mrb[0].mxu0 %v1038
        %v1126 = vpop.f32.mrb[0].mxu0
        %v1127 = vadd.f32 %v1059, %v1126
        %v1128 = vpop.f32.mrb[0].mxu0
        %1129 = vdwg.mxu0
        %v1130 = vadd.f32 %v289, %v1127
        %1131 = vst [vmem:[%s280] sm:$0xff] %v1130
        %s1132 = sand.u32 %s151, 1
        %s1133 = scalar_lea.sflag [#allocation4], %s1132
        %s1134 = sand.u32 %s151, 1
        %s1135 = smul.addr %s1134, 8
        %s1136 = scalar_lea.vmem [#allocation7], %s1135
        // Predicated region
        $region49: #{tpu_custom_call.1} parent=39 // pred_check
          %p1137 = pneg %p161
        $region50: #{tpu_custom_call.1} parent=39 // pred_check_branch
          %1139 = sbr.rel (%p1137) target = $region52
        $region51: #{tpu_custom_call.1} parent=39 // pred_region
          %s1141 = ssub.s32 128, 128
          %1142 = vsyncadd %s1133, %s1141
          %s1143 = smul.addr %s23, 128
          %s1144 = scalar_lea.hbm %s5, %s1143
          %s1146 = sshll.u32 %s1136, 4
          %s1147 = int_to_ptr.vmem [resolvable:$true] %s1146
          %1149 = dma.vmem_to_hbm [thread:$0]  %s1147, 128, %s1144, %s1133
        $region52: #{tpu_custom_call.1} parent=39 // pred_fallthru
          _
      $region40: #{tpu_custom_call.1} parent=5 // pred_fallthru
        _
      %p1150 = scmp.le.s32.totalorder 2, %s18
      // Predicated region
      $region53: #{tpu_custom_call.1} parent=5 // pred_check
        %p1151 = pneg %p1150
      $region54: #{tpu_custom_call.1} parent=5 // pred_check_branch
        %1153 = sbr.rel (%p1151) target = $region56
      $region55: #{tpu_custom_call.1} parent=5 // pred_region
        %s1154 = ssub.s32 %s18, 2
        // Predicated region
        $region57: #{tpu_custom_call.1} parent=55 // pred_check
          %p1155 = pneg %p167
        $region58: #{tpu_custom_call.1} parent=55 // pred_check_branch
          %1157 = sbr.rel (%p1155) target = $region60
        $region59: #{tpu_custom_call.1} parent=55 // pred_region
          %s1158 = sand.u32 %s152, 1
          %s1159 = scalar_lea.sflag [#allocation4], %s1158
          %s1160 = sand.u32 %s152, 1
          %s1161 = smul.addr %s1160, 8
          %s1162 = scalar_lea.vmem [#allocation7], %s1161
          %1163 = dma.done %s1159, 128
        $region60: #{tpu_custom_call.1} parent=55 // pred_fallthru
          _
      $region56: #{tpu_custom_call.1} parent=5 // pred_fallthru
        _
    $region6: #{tpu_custom_call.1} parent=1 // loop_footer
      %s22 = sadd.s32 1, %s18
    $region7: #{tpu_custom_call.1} parent=1 // loop_footer_branch
      %17 = sbr.rel target = $region3
    $region8: #{tpu_custom_call.1} parent=1 // loop_exit
      _
    %1164 = vsyncpa [#allocation3], 1
    %s1165 = scalar_lea.sflag [#allocation3], 1
    %1166 = vsyncpa %s1165, 1
    %1167 = vsyncpa [#allocation6], 1
    %1168 = vsyncpa [#allocation4], 1
    %s1169 = scalar_lea.sflag [#allocation4], 1
    %1170 = vsyncpa %s1169, 1

</llo_original>
